<compile_context>
chip_gen: v7x
topology: tpu7x:2x2x1
jax: 0.10.0
libtpu: 0.0.40
codegen_flags: <defaults>
</compile_context>

<pallas_src>
import functools

import jax
import jax.numpy as jnp
from jax.experimental import pallas as pl
from jax.experimental.pallas import tpu as pltpu


def attention_kernel(x_ref, wqkv_ref, wproj_ref, bproj_ref, o_ref, ctx_ref, *,
                     num_heads, dim, n_real):
    """One grid step == one (BT, N_pad, C) slab of the batch.

    x_ref    : (BT, N_pad, C)   bf16
    wqkv_ref : (C, 3C)          bf16  (1/sqrt(D) folded into the Q columns)
    wproj_ref: (C, C)           bf16
    bproj_ref: (1, C)           f32
    o_ref    : (BT, N_pad, C)   f32
    ctx_ref  : (BT*N_pad, C)    bf16 VMEM scratch (per-head context slots)
    """
    H = num_heads
    C = dim
    D = C // H
    BT, N, _ = x_ref.shape
    M = BT * N

    # ---- QKV projection: one full-width MXU matmul (K = C, 3C output lanes).
    x2 = x_ref[...].reshape(M, C)                       # leading-dim merge: free
    qkv = jnp.dot(x2, wqkv_ref[...],
                  preferred_element_type=jnp.float32).astype(jnp.bfloat16)

    # Key-padding mask, hoisted out of the head loop (static branch; scores
    # stay f32 so the -1e30 fill is safe).
    key_valid = None
    if n_real < N:
        key_ids = jax.lax.broadcasted_iota(jnp.int32, (1, 1, N), 2)
        key_valid = key_ids < n_real

    # ---- Per-head attention (static loop; H is small and known).
    # Head h's q/k/v are static lane slices of qkv that feed the MXU einsums
    # directly -- no stacked (H, N, D) copies, no trailing concatenate.  The
    # "bqd,bkd->bqk" / "bqk,bkd->bqd" contractions are the same patterns as
    # the flash-attention reference kernel (no hidden per-head transposes),
    # and only one head's (BT, N, N) score/prob buffers are live at a time.
    for h in range(H):
        q_h = qkv[:, h * D:(h + 1) * D].reshape(BT, N, D)          # scale pre-folded
        k_h = qkv[:, C + h * D:C + (h + 1) * D].reshape(BT, N, D)
        v_h = qkv[:, 2 * C + h * D:2 * C + (h + 1) * D].reshape(BT, N, D)

        s = jnp.einsum("bqd,bkd->bqk", q_h, k_h,
                       preferred_element_type=jnp.float32)         # (BT, N, N) f32
        if key_valid is not None:
            s = jnp.where(key_valid, s, -1e30)

        # Numerically stable softmax; normalization deferred past the PV
        # matmul (one EUP reciprocal per row instead of O(N^2) divides).
        m = jnp.max(s, axis=-1, keepdims=True)
        p = jnp.exp(s - m)
        denom = jnp.sum(p, axis=-1, keepdims=True)                  # (BT, N, 1)

        ctx = jnp.einsum("bqk,bkd->bqd", p.astype(jnp.bfloat16), v_h,
                         preferred_element_type=jnp.float32)        # (BT, N, D)
        ctx = ctx * pl.reciprocal(denom, approx=True)
        ctx_ref[:, h * D:(h + 1) * D] = ctx.reshape(M, D).astype(jnp.bfloat16)

    # ---- Output projection (+ bias): one full-width MXU matmul.
    out = jnp.dot(ctx_ref[...], wproj_ref[...],
                  preferred_element_type=jnp.float32) + bproj_ref[...]
    o_ref[...] = out.reshape(BT, N, C).astype(o_ref.dtype)


def _round_up(x, m):
    return (x + m - 1) // m * m


def _vmem_estimate(bt, n_pad, c, h, single_buffer_weights):
    """Rough per-grid-step VMEM footprint (bytes), used to size the batch tile."""
    m = bt * n_pad
    io = 2 * (m * c * 2) + 2 * (m * c * 4)         # double-buffered x(bf16)/out(f32)
    w = (3 * c * c + c * c) * 2 + c * 4            # bf16 weights + f32 bias
    w *= 1 if single_buffer_weights else 2
    qkv = m * 3 * c * (4 + 2)                      # f32 matmul result + bf16 copy
    ctx = m * c * 2                                # context scratch (bf16)
    per_head = bt * n_pad * n_pad * (4 + 4 + 2) + m * (c // h) * 4
    out_val = m * c * 4
    # 2x slack on per-head intermediates: the scheduler may keep a couple of
    # heads' buffers in flight at once.
    return io + w + qkv + ctx + 2 * per_head + out_val


def attention(x, params, *, num_heads):
    """DeiT Attention forward (qkv_bias=False, dropout p=0 / eval)."""
    B, N, C = x.shape
    assert C % num_heads == 0
    H = num_heads
    D = C // H
    scale = float(D) ** -0.5

    # Pad the sequence dim to a sublane multiple; pre-cast the activations to
    # bf16 so the streaming HBM->VMEM DMA is half-width.
    N_pad = _round_up(N, 8)
    if N_pad != N:
        x = jnp.pad(x, ((0, 0), (0, N_pad - N), (0, 0)))
    x = x.astype(jnp.bfloat16)

    # Fold the 1/sqrt(D) softmax scale into the Q columns of W_qkv and pre-cast
    # the matmul weights to bf16 (one-time host cost; f32 accumulation in-kernel).
    w_qkv = params["w_qkv"].astype(jnp.float32).at[:, :C].multiply(scale)
    w_qkv = w_qkv.astype(jnp.bfloat16)
    w_proj = params["w_proj"].astype(jnp.bfloat16)
    b_proj = params["b_proj"].reshape(1, C).astype(jnp.float32)

    # Generation-aware VMEM budget (v5e/v6e: 128 MiB, v7x: 64 MiB).
    try:
        vmem_cap = int(getattr(pltpu.get_tpu_info(), "vmem_capacity_bytes",
                               64 << 20))
    except Exception:  # conservative default (v7x-sized)
        vmem_cap = 64 << 20
    budget = int(vmem_cap * 0.7)

    # Batch tile: amortize the ~0.35us per-step overhead and enlarge the matmul
    # M dimension, while keeping grid >= 2 (so the "parallel" batch axis spans
    # both v7x TensorCores) and fitting the VMEM budget.
    bt = 1
    for cand in (8, 4, 2, 1):
        if B % cand != 0:
            continue
        if B >= 2 and B // cand < 2:
            continue
        if _vmem_estimate(cand, N_pad, C, H, True) <= budget:
            bt = cand
            break
    est = _vmem_estimate(bt, N_pad, C, H, True)
    vmem_limit = int(min(int(vmem_cap * 0.9), max(est + (8 << 20), 32 << 20)))

    kern = functools.partial(attention_kernel, num_heads=H, dim=C, n_real=N)
    grid = (B // bt,)

    def build(single_buffer_weights):
        # Grid-invariant weights: single-buffer them when the JAX version
        # supports pipeline_mode (saves ~4 * C^2 bf16 bytes of VMEM).
        w_kwargs = ({"pipeline_mode": pl.Buffered(1)}
                    if single_buffer_weights else {})
        const2 = lambda b: (0, 0)
        in_specs = [
            pl.BlockSpec((bt, N_pad, C), lambda b: (b, 0, 0)),   # x  (bf16)
            pl.BlockSpec((C, 3 * C), const2, **w_kwargs),        # W_qkv (bf16)
            pl.BlockSpec((C, C), const2, **w_kwargs),            # W_proj (bf16)
            pl.BlockSpec((1, C), const2, **w_kwargs),            # b_proj (f32)
        ]
        out_specs = pl.BlockSpec((bt, N_pad, C), lambda b: (b, 0, 0))
        return pl.pallas_call(
            kern,
            out_shape=jax.ShapeDtypeStruct((B, N_pad, C), jnp.float32),
            grid_spec=pltpu.PrefetchScalarGridSpec(
                num_scalar_prefetch=0,
                grid=grid,
                in_specs=in_specs,
                out_specs=out_specs,
                scratch_shapes=[pltpu.VMEM((bt * N_pad, C), jnp.bfloat16)],
            ),
            compiler_params=pltpu.CompilerParams(
                dimension_semantics=("parallel",),
                vmem_limit_bytes=vmem_limit,
            ),
        )

    try:
        out = build(True)(x, w_qkv, w_proj, b_proj)
    except Exception:
        # pl.Buffered(1) (single-buffered invariant weights) is not accepted by
        # every JAX version; default double buffering only costs a bit of VMEM.
        out = build(False)(x, w_qkv, w_proj, b_proj)

    if N_pad != N:
        out = out[:, :N, :]
    return out


def _reference_attention(x, params, *, num_heads):
    """Pure-JAX f32 reference mirroring the PyTorch forward (dropout = id)."""
    B, N, C = x.shape
    H = num_heads
    D = C // H
    scale = float(D) ** -0.5

    qkv = x @ params["w_qkv"]                                # (B, N, 3C)
    qkv = qkv.reshape(B, N, 3, H, D).transpose(2, 0, 3, 1, 4)
    q, k, v = qkv[0], qkv[1], qkv[2]                         # (B, H, N, D)
    attn = jnp.einsum("bhqd,bhkd->bhqk", q, k) * scale
    attn = jax.nn.softmax(attn, axis=-1)
    ctx = jnp.einsum("bhqk,bhkd->bhqd", attn, v)             # (B, H, N, D)
    ctx = ctx.transpose(0, 2, 1, 3).reshape(B, N, C)
    return ctx @ params["w_proj"] + params["b_proj"]


if __name__ == "__main__":
    # Small shapes consistent with the Attention module: (B, N, C), H heads.
    B, N, C = 2, 8, 32
    NUM_HEADS = 4

    key = jax.random.PRNGKey(0)
    ks = jax.random.split(key, 4)
    params = {
        "w_qkv": 0.05 * jax.random.normal(ks[0], (C, 3 * C), jnp.float32),
        "w_proj": 0.05 * jax.random.normal(ks[1], (C, C), jnp.float32),
        "b_proj": 0.02 * jax.random.normal(ks[2], (1, C), jnp.float32),
    }
    x = jax.random.normal(ks[3], (B, N, C), jnp.float32)

    out = jax.block_until_ready(attention(x, params, num_heads=NUM_HEADS))

    ref = _reference_attention(x, params, num_heads=NUM_HEADS)
    assert out.shape == (B, N, C)
    err = float(jnp.max(jnp.abs(out - ref)))
    # bf16 activations/weights (f32 accumulation) -> allow ~1e-2 error.
    assert jnp.allclose(out, ref, atol=2e-2, rtol=2e-2), f"max abs err = {err}"

    print("KERNEL_OK")
</pallas_src>

<mosaic_0001>
module attributes {stable_mosaic.version = 11 : i64} {
  func.func @attention_kernel(%arg0: i32, %arg1: memref<1x8x32xbf16, #tpu.memory_space<vmem>>, %arg2: memref<32x96xbf16, #tpu.memory_space<vmem>>, %arg3: memref<32x32xbf16, #tpu.memory_space<vmem>>, %arg4: memref<1x32xf32, #tpu.memory_space<vmem>>, %arg5: memref<1x8x32xf32, #tpu.memory_space<vmem>>, %arg6: memref<8x32xbf16, #tpu.memory_space<vmem>>) attributes {dimension_semantics = [#tpu.dimension_semantics<parallel>], iteration_bounds = array<i64: 2>, scalar_prefetch = 0 : i64, scratch_operands = 1 : i64, tpu.core_type = #tpu.core_type<tc>, window_params = [{transform_indices = @transform_0, window_bounds = array<i64: 1, 8, 32>}, {pipeline_mode = #tpu.pipeline_mode<synchronous>, transform_indices = @transform_1, window_bounds = array<i64: 32, 96>}, {pipeline_mode = #tpu.pipeline_mode<synchronous>, transform_indices = @transform_2, window_bounds = array<i64: 32, 32>}, {pipeline_mode = #tpu.pipeline_mode<synchronous>, transform_indices = @transform_3, window_bounds = array<i64: 1, 32>}, {transform_indices = @transform_4, window_bounds = array<i64: 1, 8, 32>}]} {
    %c0 = arith.constant 0 : index
    %c0_0 = arith.constant 0 : index
    %c0_1 = arith.constant 0 : index
    %0 = vector.load %arg1[%c0, %c0_0, %c0_1] : memref<1x8x32xbf16, #tpu.memory_space<vmem>>, vector<1x8x32xbf16>
    %1 = vector.shape_cast %0 : vector<1x8x32xbf16> to vector<8x32xbf16>
    %c0_2 = arith.constant 0 : index
    %c0_3 = arith.constant 0 : index
    %2 = vector.load %arg2[%c0_2, %c0_3] : memref<32x96xbf16, #tpu.memory_space<vmem>>, vector<32x96xbf16>
    %cst = arith.constant dense<0.000000e+00> : vector<8x96xf32>
    %3 = tpu.matmul %1, %2, %cst {dimension_numbers = #tpu.dot_dimension_numbers<[1], [0], [0], [1], [0, 0, 1, 1], [], []>} : vector<8x32xbf16>, vector<32x96xbf16>, vector<8x96xf32> -> vector<8x96xf32>
    %4 = arith.truncf %3 : vector<8x96xf32> to vector<8x96xbf16>
    %5 = vector.extract_strided_slice %4 {offsets = [0, 0], sizes = [8, 8], strides = [1, 1]} : vector<8x96xbf16> to vector<8x8xbf16>
    %6 = vector.shape_cast %5 : vector<8x8xbf16> to vector<1x8x8xbf16>
    %7 = vector.extract_strided_slice %4 {offsets = [0, 32], sizes = [8, 8], strides = [1, 1]} : vector<8x96xbf16> to vector<8x8xbf16>
    %8 = vector.shape_cast %7 : vector<8x8xbf16> to vector<1x8x8xbf16>
    %9 = vector.extract_strided_slice %4 {offsets = [0, 64], sizes = [8, 8], strides = [1, 1]} : vector<8x96xbf16> to vector<8x8xbf16>
    %10 = vector.shape_cast %9 : vector<8x8xbf16> to vector<1x8x8xbf16>
    "tpu.trace_start"() <{level = 10 : i32, message = "bqd,bkd->bqk"}> : () -> ()
    %cst_4 = arith.constant dense<0.000000e+00> : vector<1x8x8xf32>
    %11 = tpu.matmul %6, %8, %cst_4 {dimension_numbers = #tpu.dot_dimension_numbers<[2], [2], [1], [1], [0, 0, 0, 1, 1, 1], [0], [0]>} : vector<1x8x8xbf16>, vector<1x8x8xbf16>, vector<1x8x8xf32> -> vector<1x8x8xf32>
    "tpu.trace_stop"() : () -> ()
    %cst_5 = arith.constant dense<0xFF800000> : vector<1x8xf32>
    %12 = vector.multi_reduction <maximumf>, %11, %cst_5 [2] : vector<1x8x8xf32> to vector<1x8xf32>
    %13 = vector.shape_cast %12 : vector<1x8xf32> to vector<1x8x1xf32>
    %14 = vector.broadcast %13 : vector<1x8x1xf32> to vector<1x8x8xf32>
    %15 = arith.subf %11, %14 : vector<1x8x8xf32>
    %16 = math.exp %15 : vector<1x8x8xf32>
    %cst_6 = arith.constant dense<0.000000e+00> : vector<1x8xf32>
    %17 = vector.multi_reduction <add>, %16, %cst_6 [2] : vector<1x8x8xf32> to vector<1x8xf32>
    %18 = vector.shape_cast %17 : vector<1x8xf32> to vector<1x8x1xf32>
    %19 = arith.truncf %16 : vector<1x8x8xf32> to vector<1x8x8xbf16>
    "tpu.trace_start"() <{level = 10 : i32, message = "bqk,bkd->bqd"}> : () -> ()
    %cst_7 = arith.constant dense<0.000000e+00> : vector<1x8x8xf32>
    %20 = tpu.matmul %19, %10, %cst_7 {dimension_numbers = #tpu.dot_dimension_numbers<[2], [1], [1], [2], [0, 0, 0, 1, 1, 2], [0], [0]>} : vector<1x8x8xbf16>, vector<1x8x8xbf16>, vector<1x8x8xf32> -> vector<1x8x8xf32>
    "tpu.trace_stop"() : () -> ()
    %21 = tpu.reciprocal %18 {approx = true} : vector<1x8x1xf32> -> vector<1x8x1xf32>
    %22 = vector.broadcast %21 : vector<1x8x1xf32> to vector<1x8x8xf32>
    %23 = arith.mulf %20, %22 : vector<1x8x8xf32>
    %24 = vector.shape_cast %23 : vector<1x8x8xf32> to vector<8x8xf32>
    %25 = arith.truncf %24 : vector<8x8xf32> to vector<8x8xbf16>
    %c0_8 = arith.constant 0 : index
    %c0_9 = arith.constant 0 : index
    %26 = vector.load %arg6[%c0_8, %c0_9] : memref<8x32xbf16, #tpu.memory_space<vmem>>, vector<8x8xbf16>
    tpu.vector_store %arg6[%c0_8, %c0_9], %25 {strides = array<i32>} : memref<8x32xbf16, #tpu.memory_space<vmem>>, vector<8x8xbf16>,
    %27 = vector.extract_strided_slice %4 {offsets = [0, 8], sizes = [8, 8], strides = [1, 1]} : vector<8x96xbf16> to vector<8x8xbf16>
    %28 = vector.shape_cast %27 : vector<8x8xbf16> to vector<1x8x8xbf16>
    %29 = vector.extract_strided_slice %4 {offsets = [0, 40], sizes = [8, 8], strides = [1, 1]} : vector<8x96xbf16> to vector<8x8xbf16>
    %30 = vector.shape_cast %29 : vector<8x8xbf16> to vector<1x8x8xbf16>
    %31 = vector.extract_strided_slice %4 {offsets = [0, 72], sizes = [8, 8], strides = [1, 1]} : vector<8x96xbf16> to vector<8x8xbf16>
    %32 = vector.shape_cast %31 : vector<8x8xbf16> to vector<1x8x8xbf16>
    "tpu.trace_start"() <{level = 10 : i32, message = "bqd,bkd->bqk"}> : () -> ()
    %cst_10 = arith.constant dense<0.000000e+00> : vector<1x8x8xf32>
    %33 = tpu.matmul %28, %30, %cst_10 {dimension_numbers = #tpu.dot_dimension_numbers<[2], [2], [1], [1], [0, 0, 0, 1, 1, 1], [0], [0]>} : vector<1x8x8xbf16>, vector<1x8x8xbf16>, vector<1x8x8xf32> -> vector<1x8x8xf32>
    "tpu.trace_stop"() : () -> ()
    %cst_11 = arith.constant dense<0xFF800000> : vector<1x8xf32>
    %34 = vector.multi_reduction <maximumf>, %33, %cst_11 [2] : vector<1x8x8xf32> to vector<1x8xf32>
    %35 = vector.shape_cast %34 : vector<1x8xf32> to vector<1x8x1xf32>
    %36 = vector.broadcast %35 : vector<1x8x1xf32> to vector<1x8x8xf32>
    %37 = arith.subf %33, %36 : vector<1x8x8xf32>
    %38 = math.exp %37 : vector<1x8x8xf32>
    %cst_12 = arith.constant dense<0.000000e+00> : vector<1x8xf32>
    %39 = vector.multi_reduction <add>, %38, %cst_12 [2] : vector<1x8x8xf32> to vector<1x8xf32>
    %40 = vector.shape_cast %39 : vector<1x8xf32> to vector<1x8x1xf32>
    %41 = arith.truncf %38 : vector<1x8x8xf32> to vector<1x8x8xbf16>
    "tpu.trace_start"() <{level = 10 : i32, message = "bqk,bkd->bqd"}> : () -> ()
    %cst_13 = arith.constant dense<0.000000e+00> : vector<1x8x8xf32>
    %42 = tpu.matmul %41, %32, %cst_13 {dimension_numbers = #tpu.dot_dimension_numbers<[2], [1], [1], [2], [0, 0, 0, 1, 1, 2], [0], [0]>} : vector<1x8x8xbf16>, vector<1x8x8xbf16>, vector<1x8x8xf32> -> vector<1x8x8xf32>
    "tpu.trace_stop"() : () -> ()
    %43 = tpu.reciprocal %40 {approx = true} : vector<1x8x1xf32> -> vector<1x8x1xf32>
    %44 = vector.broadcast %43 : vector<1x8x1xf32> to vector<1x8x8xf32>
    %45 = arith.mulf %42, %44 : vector<1x8x8xf32>
    %46 = vector.shape_cast %45 : vector<1x8x8xf32> to vector<8x8xf32>
    %47 = arith.truncf %46 : vector<8x8xf32> to vector<8x8xbf16>
    %c0_14 = arith.constant 0 : index
    %c8 = arith.constant 8 : index
    %48 = vector.load %arg6[%c0_14, %c8] : memref<8x32xbf16, #tpu.memory_space<vmem>>, vector<8x8xbf16>
    tpu.vector_store %arg6[%c0_14, %c8], %47 {strides = array<i32>} : memref<8x32xbf16, #tpu.memory_space<vmem>>, vector<8x8xbf16>,
    %49 = vector.extract_strided_slice %4 {offsets = [0, 16], sizes = [8, 8], strides = [1, 1]} : vector<8x96xbf16> to vector<8x8xbf16>
    %50 = vector.shape_cast %49 : vector<8x8xbf16> to vector<1x8x8xbf16>
    %51 = vector.extract_strided_slice %4 {offsets = [0, 48], sizes = [8, 8], strides = [1, 1]} : vector<8x96xbf16> to vector<8x8xbf16>
    %52 = vector.shape_cast %51 : vector<8x8xbf16> to vector<1x8x8xbf16>
    %53 = vector.extract_strided_slice %4 {offsets = [0, 80], sizes = [8, 8], strides = [1, 1]} : vector<8x96xbf16> to vector<8x8xbf16>
    %54 = vector.shape_cast %53 : vector<8x8xbf16> to vector<1x8x8xbf16>
    "tpu.trace_start"() <{level = 10 : i32, message = "bqd,bkd->bqk"}> : () -> ()
    %cst_15 = arith.constant dense<0.000000e+00> : vector<1x8x8xf32>
    %55 = tpu.matmul %50, %52, %cst_15 {dimension_numbers = #tpu.dot_dimension_numbers<[2], [2], [1], [1], [0, 0, 0, 1, 1, 1], [0], [0]>} : vector<1x8x8xbf16>, vector<1x8x8xbf16>, vector<1x8x8xf32> -> vector<1x8x8xf32>
    "tpu.trace_stop"() : () -> ()
    %cst_16 = arith.constant dense<0xFF800000> : vector<1x8xf32>
    %56 = vector.multi_reduction <maximumf>, %55, %cst_16 [2] : vector<1x8x8xf32> to vector<1x8xf32>
    %57 = vector.shape_cast %56 : vector<1x8xf32> to vector<1x8x1xf32>
    %58 = vector.broadcast %57 : vector<1x8x1xf32> to vector<1x8x8xf32>
    %59 = arith.subf %55, %58 : vector<1x8x8xf32>
    %60 = math.exp %59 : vector<1x8x8xf32>
    %cst_17 = arith.constant dense<0.000000e+00> : vector<1x8xf32>
    %61 = vector.multi_reduction <add>, %60, %cst_17 [2] : vector<1x8x8xf32> to vector<1x8xf32>
    %62 = vector.shape_cast %61 : vector<1x8xf32> to vector<1x8x1xf32>
    %63 = arith.truncf %60 : vector<1x8x8xf32> to vector<1x8x8xbf16>
    "tpu.trace_start"() <{level = 10 : i32, message = "bqk,bkd->bqd"}> : () -> ()
    %cst_18 = arith.constant dense<0.000000e+00> : vector<1x8x8xf32>
    %64 = tpu.matmul %63, %54, %cst_18 {dimension_numbers = #tpu.dot_dimension_numbers<[2], [1], [1], [2], [0, 0, 0, 1, 1, 2], [0], [0]>} : vector<1x8x8xbf16>, vector<1x8x8xbf16>, vector<1x8x8xf32> -> vector<1x8x8xf32>
    "tpu.trace_stop"() : () -> ()
    %65 = tpu.reciprocal %62 {approx = true} : vector<1x8x1xf32> -> vector<1x8x1xf32>
    %66 = vector.broadcast %65 : vector<1x8x1xf32> to vector<1x8x8xf32>
    %67 = arith.mulf %64, %66 : vector<1x8x8xf32>
    %68 = vector.shape_cast %67 : vector<1x8x8xf32> to vector<8x8xf32>
    %69 = arith.truncf %68 : vector<8x8xf32> to vector<8x8xbf16>
    %c0_19 = arith.constant 0 : index
    %c16 = arith.constant 16 : index
    %70 = vector.load %arg6[%c0_19, %c16] : memref<8x32xbf16, #tpu.memory_space<vmem>>, vector<8x8xbf16>
    tpu.vector_store %arg6[%c0_19, %c16], %69 {strides = array<i32>} : memref<8x32xbf16, #tpu.memory_space<vmem>>, vector<8x8xbf16>,
    %71 = vector.extract_strided_slice %4 {offsets = [0, 24], sizes = [8, 8], strides = [1, 1]} : vector<8x96xbf16> to vector<8x8xbf16>
    %72 = vector.shape_cast %71 : vector<8x8xbf16> to vector<1x8x8xbf16>
    %73 = vector.extract_strided_slice %4 {offsets = [0, 56], sizes = [8, 8], strides = [1, 1]} : vector<8x96xbf16> to vector<8x8xbf16>
    %74 = vector.shape_cast %73 : vector<8x8xbf16> to vector<1x8x8xbf16>
    %75 = vector.extract_strided_slice %4 {offsets = [0, 88], sizes = [8, 8], strides = [1, 1]} : vector<8x96xbf16> to vector<8x8xbf16>
    %76 = vector.shape_cast %75 : vector<8x8xbf16> to vector<1x8x8xbf16>
    "tpu.trace_start"() <{level = 10 : i32, message = "bqd,bkd->bqk"}> : () -> ()
    %cst_20 = arith.constant dense<0.000000e+00> : vector<1x8x8xf32>
    %77 = tpu.matmul %72, %74, %cst_20 {dimension_numbers = #tpu.dot_dimension_numbers<[2], [2], [1], [1], [0, 0, 0, 1, 1, 1], [0], [0]>} : vector<1x8x8xbf16>, vector<1x8x8xbf16>, vector<1x8x8xf32> -> vector<1x8x8xf32>
    "tpu.trace_stop"() : () -> ()
    %cst_21 = arith.constant dense<0xFF800000> : vector<1x8xf32>
    %78 = vector.multi_reduction <maximumf>, %77, %cst_21 [2] : vector<1x8x8xf32> to vector<1x8xf32>
    %79 = vector.shape_cast %78 : vector<1x8xf32> to vector<1x8x1xf32>
    %80 = vector.broadcast %79 : vector<1x8x1xf32> to vector<1x8x8xf32>
    %81 = arith.subf %77, %80 : vector<1x8x8xf32>
    %82 = math.exp %81 : vector<1x8x8xf32>
    %cst_22 = arith.constant dense<0.000000e+00> : vector<1x8xf32>
    %83 = vector.multi_reduction <add>, %82, %cst_22 [2] : vector<1x8x8xf32> to vector<1x8xf32>
    %84 = vector.shape_cast %83 : vector<1x8xf32> to vector<1x8x1xf32>
    %85 = arith.truncf %82 : vector<1x8x8xf32> to vector<1x8x8xbf16>
    "tpu.trace_start"() <{level = 10 : i32, message = "bqk,bkd->bqd"}> : () -> ()
    %cst_23 = arith.constant dense<0.000000e+00> : vector<1x8x8xf32>
    %86 = tpu.matmul %85, %76, %cst_23 {dimension_numbers = #tpu.dot_dimension_numbers<[2], [1], [1], [2], [0, 0, 0, 1, 1, 2], [0], [0]>} : vector<1x8x8xbf16>, vector<1x8x8xbf16>, vector<1x8x8xf32> -> vector<1x8x8xf32>
    "tpu.trace_stop"() : () -> ()
    %87 = tpu.reciprocal %84 {approx = true} : vector<1x8x1xf32> -> vector<1x8x1xf32>
    %88 = vector.broadcast %87 : vector<1x8x1xf32> to vector<1x8x8xf32>
    %89 = arith.mulf %86, %88 : vector<1x8x8xf32>
    %90 = vector.shape_cast %89 : vector<1x8x8xf32> to vector<8x8xf32>
    %91 = arith.truncf %90 : vector<8x8xf32> to vector<8x8xbf16>
    %c0_24 = arith.constant 0 : index
    %c24 = arith.constant 24 : index
    %92 = vector.load %arg6[%c0_24, %c24] : memref<8x32xbf16, #tpu.memory_space<vmem>>, vector<8x8xbf16>
    tpu.vector_store %arg6[%c0_24, %c24], %91 {strides = array<i32>} : memref<8x32xbf16, #tpu.memory_space<vmem>>, vector<8x8xbf16>,
    %c0_25 = arith.constant 0 : index
    %c0_26 = arith.constant 0 : index
    %93 = vector.load %arg6[%c0_25, %c0_26] : memref<8x32xbf16, #tpu.memory_space<vmem>>, vector<8x32xbf16>
    %c0_27 = arith.constant 0 : index
    %c0_28 = arith.constant 0 : index
    %94 = vector.load %arg3[%c0_27, %c0_28] : memref<32x32xbf16, #tpu.memory_space<vmem>>, vector<32x32xbf16>
    %cst_29 = arith.constant dense<0.000000e+00> : vector<8x32xf32>
    %95 = tpu.matmul %93, %94, %cst_29 {dimension_numbers = #tpu.dot_dimension_numbers<[1], [0], [0], [1], [0, 0, 1, 1], [], []>} : vector<8x32xbf16>, vector<32x32xbf16>, vector<8x32xf32> -> vector<8x32xf32>
    %c0_30 = arith.constant 0 : index
    %c0_31 = arith.constant 0 : index
    %96 = vector.load %arg4[%c0_30, %c0_31] : memref<1x32xf32, #tpu.memory_space<vmem>>, vector<1x32xf32>
    %97 = vector.broadcast %96 : vector<1x32xf32> to vector<8x32xf32>
    %98 = arith.addf %95, %97 : vector<8x32xf32>
    %99 = vector.shape_cast %98 : vector<8x32xf32> to vector<1x8x32xf32>
    %c0_32 = arith.constant 0 : index
    %c0_33 = arith.constant 0 : index
    %c0_34 = arith.constant 0 : index
    %100 = vector.load %arg5[%c0_32, %c0_33, %c0_34] : memref<1x8x32xf32, #tpu.memory_space<vmem>>, vector<1x8x32xf32>
    tpu.vector_store %arg5[%c0_32, %c0_33, %c0_34], %99 {strides = array<i32>} : memref<1x8x32xf32, #tpu.memory_space<vmem>>, vector<1x8x32xf32>,
    return
  }
  func.func @transform_0(%arg0: i32) -> (i32, i32, i32) {
    %c0_i32 = arith.constant 0 : i32
    %c0_i32_0 = arith.constant 0 : i32
    %c0_i32_1 = arith.constant 0 : i32
    return %arg0, %c0_i32, %c0_i32_0 : i32, i32, i32
  }
  func.func @transform_1(%arg0: i32) -> (i32, i32) {
    %c0_i32 = arith.constant 0 : i32
    %c0_i32_0 = arith.constant 0 : i32
    %c0_i32_1 = arith.constant 0 : i32
    return %c0_i32, %c0_i32_0 : i32, i32
  }
  func.func @transform_2(%arg0: i32) -> (i32, i32) {
    %c0_i32 = arith.constant 0 : i32
    %c0_i32_0 = arith.constant 0 : i32
    %c0_i32_1 = arith.constant 0 : i32
    return %c0_i32, %c0_i32_0 : i32, i32
  }
  func.func @transform_3(%arg0: i32) -> (i32, i32) {
    %c0_i32 = arith.constant 0 : i32
    %c0_i32_0 = arith.constant 0 : i32
    %c0_i32_1 = arith.constant 0 : i32
    return %c0_i32, %c0_i32_0 : i32, i32
  }
  func.func @transform_4(%arg0: i32) -> (i32, i32, i32) {
    %c0_i32 = arith.constant 0 : i32
    %c0_i32_0 = arith.constant 0 : i32
    %c0_i32_1 = arith.constant 0 : i32
    return %arg0, %c0_i32, %c0_i32_0 : i32, i32, i32
  }
}

module attributes {stable_mosaic.version = 11 : i64} {
  func.func @attention_kernel(%arg0: i32, %arg1: memref<1x8x32xbf16, #tpu.memory_space<vmem>>, %arg2: memref<32x96xbf16, #tpu.memory_space<vmem>>, %arg3: memref<32x32xbf16, #tpu.memory_space<vmem>>, %arg4: memref<1x32xf32, #tpu.memory_space<vmem>>, %arg5: memref<1x8x32xf32, #tpu.memory_space<vmem>>, %arg6: memref<8x32xbf16, #tpu.memory_space<vmem>>) attributes {dimension_semantics = [#tpu.dimension_semantics<parallel>], iteration_bounds = array<i64: 2>, scalar_prefetch = 0 : i64, scratch_operands = 1 : i64, tpu.core_type = #tpu.core_type<tc>, window_params = [{transform_indices = @transform_0, window_bounds = array<i64: 1, 8, 32>}, {pipeline_mode = #tpu.pipeline_mode<synchronous>, transform_indices = @transform_1, window_bounds = array<i64: 32, 96>}, {pipeline_mode = #tpu.pipeline_mode<synchronous>, transform_indices = @transform_2, window_bounds = array<i64: 32, 32>}, {pipeline_mode = #tpu.pipeline_mode<synchronous>, transform_indices = @transform_3, window_bounds = array<i64: 1, 32>}, {transform_indices = @transform_4, window_bounds = array<i64: 1, 8, 32>}]} {
    %c0 = arith.constant 0 : index
    %c0_0 = arith.constant 0 : index
    %c0_1 = arith.constant 0 : index
    %0 = vector.load %arg1[%c0, %c0_0, %c0_1] : memref<1x8x32xbf16, #tpu.memory_space<vmem>>, vector<1x8x32xbf16>
    %1 = vector.shape_cast %0 : vector<1x8x32xbf16> to vector<8x32xbf16>
    %c0_2 = arith.constant 0 : index
    %c0_3 = arith.constant 0 : index
    %2 = vector.load %arg2[%c0_2, %c0_3] : memref<32x96xbf16, #tpu.memory_space<vmem>>, vector<32x96xbf16>
    %cst = arith.constant dense<0.000000e+00> : vector<8x96xf32>
    %3 = tpu.matmul %1, %2, %cst {dimension_numbers = #tpu.dot_dimension_numbers<[1], [0], [0], [1], [0, 0, 1, 1], [], []>} : vector<8x32xbf16>, vector<32x96xbf16>, vector<8x96xf32> -> vector<8x96xf32>
    %4 = arith.truncf %3 : vector<8x96xf32> to vector<8x96xbf16>
    %5 = vector.extract_strided_slice %4 {offsets = [0, 0], sizes = [8, 8], strides = [1, 1]} : vector<8x96xbf16> to vector<8x8xbf16>
    %6 = vector.shape_cast %5 : vector<8x8xbf16> to vector<1x8x8xbf16>
    %7 = vector.extract_strided_slice %4 {offsets = [0, 32], sizes = [8, 8], strides = [1, 1]} : vector<8x96xbf16> to vector<8x8xbf16>
    %8 = vector.shape_cast %7 : vector<8x8xbf16> to vector<1x8x8xbf16>
    %9 = vector.extract_strided_slice %4 {offsets = [0, 64], sizes = [8, 8], strides = [1, 1]} : vector<8x96xbf16> to vector<8x8xbf16>
    %10 = vector.shape_cast %9 : vector<8x8xbf16> to vector<1x8x8xbf16>
    "tpu.trace_start"() <{level = 10 : i32, message = "bqd,bkd->bqk"}> : () -> ()
    %cst_4 = arith.constant dense<0.000000e+00> : vector<1x8x8xf32>
    %11 = tpu.matmul %6, %8, %cst_4 {dimension_numbers = #tpu.dot_dimension_numbers<[2], [2], [1], [1], [0, 0, 0, 1, 1, 1], [0], [0]>} : vector<1x8x8xbf16>, vector<1x8x8xbf16>, vector<1x8x8xf32> -> vector<1x8x8xf32>
    "tpu.trace_stop"() : () -> ()
    %cst_5 = arith.constant dense<0xFF800000> : vector<1x8xf32>
    %12 = vector.multi_reduction <maximumf>, %11, %cst_5 [2] : vector<1x8x8xf32> to vector<1x8xf32>
    %13 = vector.shape_cast %12 : vector<1x8xf32> to vector<1x8x1xf32>
    %14 = vector.broadcast %13 : vector<1x8x1xf32> to vector<1x8x8xf32>
    %15 = arith.subf %11, %14 : vector<1x8x8xf32>
    %16 = math.exp %15 : vector<1x8x8xf32>
    %cst_6 = arith.constant dense<0.000000e+00> : vector<1x8xf32>
    %17 = vector.multi_reduction <add>, %16, %cst_6 [2] : vector<1x8x8xf32> to vector<1x8xf32>
    %18 = vector.shape_cast %17 : vector<1x8xf32> to vector<1x8x1xf32>
    %19 = arith.truncf %16 : vector<1x8x8xf32> to vector<1x8x8xbf16>
    "tpu.trace_start"() <{level = 10 : i32, message = "bqk,bkd->bqd"}> : () -> ()
    %cst_7 = arith.constant dense<0.000000e+00> : vector<1x8x8xf32>
    %20 = tpu.matmul %19, %10, %cst_7 {dimension_numbers = #tpu.dot_dimension_numbers<[2], [1], [1], [2], [0, 0, 0, 1, 1, 2], [0], [0]>} : vector<1x8x8xbf16>, vector<1x8x8xbf16>, vector<1x8x8xf32> -> vector<1x8x8xf32>
    "tpu.trace_stop"() : () -> ()
    %21 = tpu.reciprocal %18 {approx = true} : vector<1x8x1xf32> -> vector<1x8x1xf32>
    %22 = vector.broadcast %21 : vector<1x8x1xf32> to vector<1x8x8xf32>
    %23 = arith.mulf %20, %22 : vector<1x8x8xf32>
    %24 = vector.shape_cast %23 : vector<1x8x8xf32> to vector<8x8xf32>
    %25 = arith.truncf %24 : vector<8x8xf32> to vector<8x8xbf16>
    %c0_8 = arith.constant 0 : index
    %c0_9 = arith.constant 0 : index
    %26 = vector.load %arg6[%c0_8, %c0_9] : memref<8x32xbf16, #tpu.memory_space<vmem>>, vector<8x8xbf16>
    tpu.vector_store %arg6[%c0_8, %c0_9], %25 {strides = array<i32>} : memref<8x32xbf16, #tpu.memory_space<vmem>>, vector<8x8xbf16>,
    %27 = vector.extract_strided_slice %4 {offsets = [0, 8], sizes = [8, 8], strides = [1, 1]} : vector<8x96xbf16> to vector<8x8xbf16>
    %28 = vector.shape_cast %27 : vector<8x8xbf16> to vector<1x8x8xbf16>
    %29 = vector.extract_strided_slice %4 {offsets = [0, 40], sizes = [8, 8], strides = [1, 1]} : vector<8x96xbf16> to vector<8x8xbf16>
    %30 = vector.shape_cast %29 : vector<8x8xbf16> to vector<1x8x8xbf16>
    %31 = vector.extract_strided_slice %4 {offsets = [0, 72], sizes = [8, 8], strides = [1, 1]} : vector<8x96xbf16> to vector<8x8xbf16>
    %32 = vector.shape_cast %31 : vector<8x8xbf16> to vector<1x8x8xbf16>
    "tpu.trace_start"() <{level = 10 : i32, message = "bqd,bkd->bqk"}> : () -> ()
    %cst_10 = arith.constant dense<0.000000e+00> : vector<1x8x8xf32>
    %33 = tpu.matmul %28, %30, %cst_10 {dimension_numbers = #tpu.dot_dimension_numbers<[2], [2], [1], [1], [0, 0, 0, 1, 1, 1], [0], [0]>} : vector<1x8x8xbf16>, vector<1x8x8xbf16>, vector<1x8x8xf32> -> vector<1x8x8xf32>
    "tpu.trace_stop"() : () -> ()
    %cst_11 = arith.constant dense<0xFF800000> : vector<1x8xf32>
    %34 = vector.multi_reduction <maximumf>, %33, %cst_11 [2] : vector<1x8x8xf32> to vector<1x8xf32>
    %35 = vector.shape_cast %34 : vector<1x8xf32> to vector<1x8x1xf32>
    %36 = vector.broadcast %35 : vector<1x8x1xf32> to vector<1x8x8xf32>
    %37 = arith.subf %33, %36 : vector<1x8x8xf32>
    %38 = math.exp %37 : vector<1x8x8xf32>
    %cst_12 = arith.constant dense<0.000000e+00> : vector<1x8xf32>
    %39 = vector.multi_reduction <add>, %38, %cst_12 [2] : vector<1x8x8xf32> to vector<1x8xf32>
    %40 = vector.shape_cast %39 : vector<1x8xf32> to vector<1x8x1xf32>
    %41 = arith.truncf %38 : vector<1x8x8xf32> to vector<1x8x8xbf16>
    "tpu.trace_start"() <{level = 10 : i32, message = "bqk,bkd->bqd"}> : () -> ()
    %cst_13 = arith.constant dense<0.000000e+00> : vector<1x8x8xf32>
    %42 = tpu.matmul %41, %32, %cst_13 {dimension_numbers = #tpu.dot_dimension_numbers<[2], [1], [1], [2], [0, 0, 0, 1, 1, 2], [0], [0]>} : vector<1x8x8xbf16>, vector<1x8x8xbf16>, vector<1x8x8xf32> -> vector<1x8x8xf32>
    "tpu.trace_stop"() : () -> ()
    %43 = tpu.reciprocal %40 {approx = true} : vector<1x8x1xf32> -> vector<1x8x1xf32>
    %44 = vector.broadcast %43 : vector<1x8x1xf32> to vector<1x8x8xf32>
    %45 = arith.mulf %42, %44 : vector<1x8x8xf32>
    %46 = vector.shape_cast %45 : vector<1x8x8xf32> to vector<8x8xf32>
    %47 = arith.truncf %46 : vector<8x8xf32> to vector<8x8xbf16>
    %c0_14 = arith.constant 0 : index
    %c8 = arith.constant 8 : index
    %48 = vector.load %arg6[%c0_14, %c8] : memref<8x32xbf16, #tpu.memory_space<vmem>>, vector<8x8xbf16>
    tpu.vector_store %arg6[%c0_14, %c8], %47 {strides = array<i32>} : memref<8x32xbf16, #tpu.memory_space<vmem>>, vector<8x8xbf16>,
    %49 = vector.extract_strided_slice %4 {offsets = [0, 16], sizes = [8, 8], strides = [1, 1]} : vector<8x96xbf16> to vector<8x8xbf16>
    %50 = vector.shape_cast %49 : vector<8x8xbf16> to vector<1x8x8xbf16>
    %51 = vector.extract_strided_slice %4 {offsets = [0, 48], sizes = [8, 8], strides = [1, 1]} : vector<8x96xbf16> to vector<8x8xbf16>
    %52 = vector.shape_cast %51 : vector<8x8xbf16> to vector<1x8x8xbf16>
    %53 = vector.extract_strided_slice %4 {offsets = [0, 80], sizes = [8, 8], strides = [1, 1]} : vector<8x96xbf16> to vector<8x8xbf16>
    %54 = vector.shape_cast %53 : vector<8x8xbf16> to vector<1x8x8xbf16>
    "tpu.trace_start"() <{level = 10 : i32, message = "bqd,bkd->bqk"}> : () -> ()
    %cst_15 = arith.constant dense<0.000000e+00> : vector<1x8x8xf32>
    %55 = tpu.matmul %50, %52, %cst_15 {dimension_numbers = #tpu.dot_dimension_numbers<[2], [2], [1], [1], [0, 0, 0, 1, 1, 1], [0], [0]>} : vector<1x8x8xbf16>, vector<1x8x8xbf16>, vector<1x8x8xf32> -> vector<1x8x8xf32>
    "tpu.trace_stop"() : () -> ()
    %cst_16 = arith.constant dense<0xFF800000> : vector<1x8xf32>
    %56 = vector.multi_reduction <maximumf>, %55, %cst_16 [2] : vector<1x8x8xf32> to vector<1x8xf32>
    %57 = vector.shape_cast %56 : vector<1x8xf32> to vector<1x8x1xf32>
    %58 = vector.broadcast %57 : vector<1x8x1xf32> to vector<1x8x8xf32>
    %59 = arith.subf %55, %58 : vector<1x8x8xf32>
    %60 = math.exp %59 : vector<1x8x8xf32>
    %cst_17 = arith.constant dense<0.000000e+00> : vector<1x8xf32>
    %61 = vector.multi_reduction <add>, %60, %cst_17 [2] : vector<1x8x8xf32> to vector<1x8xf32>
    %62 = vector.shape_cast %61 : vector<1x8xf32> to vector<1x8x1xf32>
    %63 = arith.truncf %60 : vector<1x8x8xf32> to vector<1x8x8xbf16>
    "tpu.trace_start"() <{level = 10 : i32, message = "bqk,bkd->bqd"}> : () -> ()
    %cst_18 = arith.constant dense<0.000000e+00> : vector<1x8x8xf32>
    %64 = tpu.matmul %63, %54, %cst_18 {dimension_numbers = #tpu.dot_dimension_numbers<[2], [1], [1], [2], [0, 0, 0, 1, 1, 2], [0], [0]>} : vector<1x8x8xbf16>, vector<1x8x8xbf16>, vector<1x8x8xf32> -> vector<1x8x8xf32>
    "tpu.trace_stop"() : () -> ()
    %65 = tpu.reciprocal %62 {approx = true} : vector<1x8x1xf32> -> vector<1x8x1xf32>
    %66 = vector.broadcast %65 : vector<1x8x1xf32> to vector<1x8x8xf32>
    %67 = arith.mulf %64, %66 : vector<1x8x8xf32>
    %68 = vector.shape_cast %67 : vector<1x8x8xf32> to vector<8x8xf32>
    %69 = arith.truncf %68 : vector<8x8xf32> to vector<8x8xbf16>
    %c0_19 = arith.constant 0 : index
    %c16 = arith.constant 16 : index
    %70 = vector.load %arg6[%c0_19, %c16] : memref<8x32xbf16, #tpu.memory_space<vmem>>, vector<8x8xbf16>
    tpu.vector_store %arg6[%c0_19, %c16], %69 {strides = array<i32>} : memref<8x32xbf16, #tpu.memory_space<vmem>>, vector<8x8xbf16>,
    %71 = vector.extract_strided_slice %4 {offsets = [0, 24], sizes = [8, 8], strides = [1, 1]} : vector<8x96xbf16> to vector<8x8xbf16>
    %72 = vector.shape_cast %71 : vector<8x8xbf16> to vector<1x8x8xbf16>
    %73 = vector.extract_strided_slice %4 {offsets = [0, 56], sizes = [8, 8], strides = [1, 1]} : vector<8x96xbf16> to vector<8x8xbf16>
    %74 = vector.shape_cast %73 : vector<8x8xbf16> to vector<1x8x8xbf16>
    %75 = vector.extract_strided_slice %4 {offsets = [0, 88], sizes = [8, 8], strides = [1, 1]} : vector<8x96xbf16> to vector<8x8xbf16>
    %76 = vector.shape_cast %75 : vector<8x8xbf16> to vector<1x8x8xbf16>
    "tpu.trace_start"() <{level = 10 : i32, message = "bqd,bkd->bqk"}> : () -> ()
    %cst_20 = arith.constant dense<0.000000e+00> : vector<1x8x8xf32>
    %77 = tpu.matmul %72, %74, %cst_20 {dimension_numbers = #tpu.dot_dimension_numbers<[2], [2], [1], [1], [0, 0, 0, 1, 1, 1], [0], [0]>} : vector<1x8x8xbf16>, vector<1x8x8xbf16>, vector<1x8x8xf32> -> vector<1x8x8xf32>
    "tpu.trace_stop"() : () -> ()
    %cst_21 = arith.constant dense<0xFF800000> : vector<1x8xf32>
    %78 = vector.multi_reduction <maximumf>, %77, %cst_21 [2] : vector<1x8x8xf32> to vector<1x8xf32>
    %79 = vector.shape_cast %78 : vector<1x8xf32> to vector<1x8x1xf32>
    %80 = vector.broadcast %79 : vector<1x8x1xf32> to vector<1x8x8xf32>
    %81 = arith.subf %77, %80 : vector<1x8x8xf32>
    %82 = math.exp %81 : vector<1x8x8xf32>
    %cst_22 = arith.constant dense<0.000000e+00> : vector<1x8xf32>
    %83 = vector.multi_reduction <add>, %82, %cst_22 [2] : vector<1x8x8xf32> to vector<1x8xf32>
    %84 = vector.shape_cast %83 : vector<1x8xf32> to vector<1x8x1xf32>
    %85 = arith.truncf %82 : vector<1x8x8xf32> to vector<1x8x8xbf16>
    "tpu.trace_start"() <{level = 10 : i32, message = "bqk,bkd->bqd"}> : () -> ()
    %cst_23 = arith.constant dense<0.000000e+00> : vector<1x8x8xf32>
    %86 = tpu.matmul %85, %76, %cst_23 {dimension_numbers = #tpu.dot_dimension_numbers<[2], [1], [1], [2], [0, 0, 0, 1, 1, 2], [0], [0]>} : vector<1x8x8xbf16>, vector<1x8x8xbf16>, vector<1x8x8xf32> -> vector<1x8x8xf32>
    "tpu.trace_stop"() : () -> ()
    %87 = tpu.reciprocal %84 {approx = true} : vector<1x8x1xf32> -> vector<1x8x1xf32>
    %88 = vector.broadcast %87 : vector<1x8x1xf32> to vector<1x8x8xf32>
    %89 = arith.mulf %86, %88 : vector<1x8x8xf32>
    %90 = vector.shape_cast %89 : vector<1x8x8xf32> to vector<8x8xf32>
    %91 = arith.truncf %90 : vector<8x8xf32> to vector<8x8xbf16>
    %c0_24 = arith.constant 0 : index
    %c24 = arith.constant 24 : index
    %92 = vector.load %arg6[%c0_24, %c24] : memref<8x32xbf16, #tpu.memory_space<vmem>>, vector<8x8xbf16>
    tpu.vector_store %arg6[%c0_24, %c24], %91 {strides = array<i32>} : memref<8x32xbf16, #tpu.memory_space<vmem>>, vector<8x8xbf16>,
    %c0_25 = arith.constant 0 : index
    %c0_26 = arith.constant 0 : index
    %93 = vector.load %arg6[%c0_25, %c0_26] : memref<8x32xbf16, #tpu.memory_space<vmem>>, vector<8x32xbf16>
    %c0_27 = arith.constant 0 : index
    %c0_28 = arith.constant 0 : index
    %94 = vector.load %arg3[%c0_27, %c0_28] : memref<32x32xbf16, #tpu.memory_space<vmem>>, vector<32x32xbf16>
    %cst_29 = arith.constant dense<0.000000e+00> : vector<8x32xf32>
    %95 = tpu.matmul %93, %94, %cst_29 {dimension_numbers = #tpu.dot_dimension_numbers<[1], [0], [0], [1], [0, 0, 1, 1], [], []>} : vector<8x32xbf16>, vector<32x32xbf16>, vector<8x32xf32> -> vector<8x32xf32>
    %c0_30 = arith.constant 0 : index
    %c0_31 = arith.constant 0 : index
    %96 = vector.load %arg4[%c0_30, %c0_31] : memref<1x32xf32, #tpu.memory_space<vmem>>, vector<1x32xf32>
    %97 = vector.broadcast %96 : vector<1x32xf32> to vector<8x32xf32>
    %98 = arith.addf %95, %97 : vector<8x32xf32>
    %99 = vector.shape_cast %98 : vector<8x32xf32> to vector<1x8x32xf32>
    %c0_32 = arith.constant 0 : index
    %c0_33 = arith.constant 0 : index
    %c0_34 = arith.constant 0 : index
    %100 = vector.load %arg5[%c0_32, %c0_33, %c0_34] : memref<1x8x32xf32, #tpu.memory_space<vmem>>, vector<1x8x32xf32>
    tpu.vector_store %arg5[%c0_32, %c0_33, %c0_34], %99 {strides = array<i32>} : memref<1x8x32xf32, #tpu.memory_space<vmem>>, vector<1x8x32xf32>,
    return
  }
  func.func @transform_0(%arg0: i32) -> (i32, i32, i32) {
    %c0_i32 = arith.constant 0 : i32
    %c0_i32_0 = arith.constant 0 : i32
    %c0_i32_1 = arith.constant 0 : i32
    return %arg0, %c0_i32, %c0_i32_0 : i32, i32, i32
  }
  func.func @transform_1(%arg0: i32) -> (i32, i32) {
    %c0_i32 = arith.constant 0 : i32
    %c0_i32_0 = arith.constant 0 : i32
    %c0_i32_1 = arith.constant 0 : i32
    return %c0_i32, %c0_i32_0 : i32, i32
  }
  func.func @transform_2(%arg0: i32) -> (i32, i32) {
    %c0_i32 = arith.constant 0 : i32
    %c0_i32_0 = arith.constant 0 : i32
    %c0_i32_1 = arith.constant 0 : i32
    return %c0_i32, %c0_i32_0 : i32, i32
  }
  func.func @transform_3(%arg0: i32) -> (i32, i32) {
    %c0_i32 = arith.constant 0 : i32
    %c0_i32_0 = arith.constant 0 : i32
    %c0_i32_1 = arith.constant 0 : i32
    return %c0_i32, %c0_i32_0 : i32, i32
  }
  func.func @transform_4(%arg0: i32) -> (i32, i32, i32) {
    %c0_i32 = arith.constant 0 : i32
    %c0_i32_0 = arith.constant 0 : i32
    %c0_i32_1 = arith.constant 0 : i32
    return %arg0, %c0_i32, %c0_i32_0 : i32, i32, i32
  }
}

</mosaic_0001>

<llo_original>
// kernel: tpu_custom_call.1
$region0: #{tpu_custom_call.1}
  #allocation0 [shape = 'u32[]', space=smem, size = 0x4, offset = 0x4, fixed_abs, tag = 'smem constant byte address 0x4 - core index']
  #allocation1 [shape = 'u32[144,128]{1,0:T(1,128)}', space=vmem, size = 0x12000, scoped, tag = 'internal scratch']
  #allocation2 [shape = 'bf16[8,32]{1,0:T(8,128)(2,1)}', space=vmem, size = 0x800, scoped, tag = 'scratch operand']
  %s0 = inlined_call_operand.hbm [shape: bf16[2,8,32], index: 0, kind: input, shape index: {}]
  %s1 = inlined_call_operand.hbm [shape: bf16[32,96], index: 1, kind: input, shape index: {}]
  %s2 = inlined_call_operand.hbm [shape: bf16[32,32], index: 2, kind: input, shape index: {}]
  %s3 = inlined_call_operand.vmem [shape: f32[1,32], index: 3, kind: input, shape index: {}]
  %s4 = inlined_call_operand.hbm [shape: f32[2,8,32], index: 4, kind: output, shape index: {}]
  %s5 = sld [smem:[#allocation0]]
  $region61: #{tpu_custom_call.1} parent=0
    _
  %s7 = ssub.s32 1, %s5
  %s8 = scalar_select 0, %s7, %s5
  $region1: #{tpu_custom_call.1} parent=0
    #allocation3 [shape = 'u8[4096]{0}', space=vmem, size = 0x1000, scoped, tag = 'input window, operand 0']
    #allocation4 [shape = 's32[2]{0}', space=sflag, size = 0x8, scoped, tag = 'scoped memory for tpu_custom_call.1']
    #allocation5 [shape = 's32[2]{0}', space=sflag, size = 0x8, scoped, tag = 'scoped memory for tpu_custom_call.1']
    #allocation6 [shape = 'u8[8192]{0}', space=vmem, size = 0x2000, scoped, tag = 'input window, operand 1, single buffered']
    #allocation7 [shape = 's32[1]{0}', space=sflag, size = 0x4, scoped, tag = 'scoped memory for tpu_custom_call.1']
    #allocation8 [shape = 'u8[8192]{0}', space=vmem, size = 0x2000, scoped, tag = 'input window, operand 2, single buffered']
    #allocation9 [shape = 'u8[8192]{0}', space=vmem, size = 0x2000, scoped, tag = 'output window, operand 0']
    %9 = vsyncpa [#allocation4], 0
    %s10 = scalar_lea.sflag [#allocation4], 1
    %11 = vsyncpa %s10, 0
    %12 = vsyncpa [#allocation7], 0
    %13 = vsyncpa [#allocation5], 0
    %s14 = scalar_lea.sflag [#allocation5], 1
    %15 = vsyncpa %s14, 0
    loop: start=0, step=1, limit=4
    $region2: #{tpu_custom_call.1} parent=1 // loop_pre_header
      _
    $region3: #{tpu_custom_call.1} parent=1 // loop_header
      %s17 = sphi 0, %s21
      %p18 = scmp.ge.s32.totalorder %s17, 4
      %s27 = sphi 0, %s29
      %s30 = sphi 0, %s27
      %s31 = sphi 0, %s30
      %s47 = sphi 0, %s31
      %s51 = sphi 0, %s51
      %s53 = sphi 0, %s51
      %s54 = sphi 0, %s53
      %s68 = sphi 0, %s54
      %s72 = sphi 0, %s72
      %s74 = sphi 0, %s72
      %s75 = sphi 0, %s74
      %s89 = sphi 0, %s75
      %s93 = sphi 0, %s93
      %s95 = sphi 0, %s93
      %s96 = sphi 0, %s95
      %s110 = sphi 0, %s96
      %s116 = sphi 0, %s118
      %s119 = sphi 0, %s116
      %s120 = sphi 0, %s119
      %s136 = sphi 0, %s120
    $region4: #{tpu_custom_call.1} parent=1 // loop_header_branch
      %20 = sbr.rel (%p18) target = $region8
    $region5: #{tpu_custom_call.1} parent=1 // loop_body
      %s22 = ssub.s32 %s17, 1
      %s23 = ssub.s32 %s17, 2
      %s24 = sadd.s32 %s17, 1
      %s25 = ssub.s32 %s17, %s24
      %p26 = scmp.eq.s32.totalorder %s25, 0
      %s28 = sadd.s32 %s27, 1
      %s29 = scalar_select %p26, %s27, %s28
      %p32 = pneg %p26
      %p33 = scmp.eq.s32.totalorder %s17, 1
      %p34 = por %p32, %p33
      %p35 = scmp.ne.s32.totalorder %s27, %s30
      %p36 = scmp.eq.s32.totalorder %s17, 0
      %p37 = por %p35, %p36
      %p38 = scmp.ne.s32.totalorder %s27, %s30
      %p39 = scmp.eq.s32.totalorder %s22, 1
      %p40 = por %p38, %p39
      %p41 = scmp.ne.s32.totalorder %s30, %s31
      %p42 = scmp.eq.s32.totalorder %s22, 0
      %p43 = por %p41, %p42
      %p44 = scmp.ne.s32.totalorder %s30, %s31
      %p45 = scmp.eq.s32.totalorder %s23, 1
      %p46 = por %p44, %p45
      %p48 = scmp.ne.s32.totalorder %s31, %s47
      %p49 = scmp.eq.s32.totalorder %s23, 0
      %p50 = por %p48, %p49
      %s52 = sadd.s32 %s51, 1
      %p55 = scmp.eq.s32.totalorder %s17, 1
      %p56 = scmp.ne.s32.totalorder %s51, %s53
      %p57 = scmp.eq.s32.totalorder %s17, 0
      %p58 = por %p56, %p57
      %p59 = scmp.ne.s32.totalorder %s51, %s53
      %p60 = scmp.eq.s32.totalorder %s22, 1
      %p61 = por %p59, %p60
      %p62 = scmp.ne.s32.totalorder %s53, %s54
      %p63 = scmp.eq.s32.totalorder %s22, 0
      %p64 = por %p62, %p63
      %p65 = scmp.ne.s32.totalorder %s53, %s54
      %p66 = scmp.eq.s32.totalorder %s23, 1
      %p67 = por %p65, %p66
      %p69 = scmp.ne.s32.totalorder %s54, %s68
      %p70 = scmp.eq.s32.totalorder %s23, 0
      %p71 = por %p69, %p70
      %s73 = sadd.s32 %s72, 1
      %p76 = scmp.eq.s32.totalorder %s17, 1
      %p77 = scmp.ne.s32.totalorder %s72, %s74
      %p78 = scmp.eq.s32.totalorder %s17, 0
      %p79 = por %p77, %p78
      %p80 = scmp.ne.s32.totalorder %s72, %s74
      %p81 = scmp.eq.s32.totalorder %s22, 1
      %p82 = por %p80, %p81
      %p83 = scmp.ne.s32.totalorder %s74, %s75
      %p84 = scmp.eq.s32.totalorder %s22, 0
      %p85 = por %p83, %p84
      %p86 = scmp.ne.s32.totalorder %s74, %s75
      %p87 = scmp.eq.s32.totalorder %s23, 1
      %p88 = por %p86, %p87
      %p90 = scmp.ne.s32.totalorder %s75, %s89
      %p91 = scmp.eq.s32.totalorder %s23, 0
      %p92 = por %p90, %p91
      %s94 = sadd.s32 %s93, 1
      %p97 = scmp.eq.s32.totalorder %s17, 1
      %p98 = scmp.ne.s32.totalorder %s93, %s95
      %p99 = scmp.eq.s32.totalorder %s17, 0
      %p100 = por %p98, %p99
      %p101 = scmp.ne.s32.totalorder %s93, %s95
      %p102 = scmp.eq.s32.totalorder %s22, 1
      %p103 = por %p101, %p102
      %p104 = scmp.ne.s32.totalorder %s95, %s96
      %p105 = scmp.eq.s32.totalorder %s22, 0
      %p106 = por %p104, %p105
      %p107 = scmp.ne.s32.totalorder %s95, %s96
      %p108 = scmp.eq.s32.totalorder %s23, 1
      %p109 = por %p107, %p108
      %p111 = scmp.ne.s32.totalorder %s96, %s110
      %p112 = scmp.eq.s32.totalorder %s23, 0
      %p113 = por %p111, %p112
      %s114 = ssub.s32 %s17, %s24
      %p115 = scmp.eq.s32.totalorder %s114, 0
      %s117 = sadd.s32 %s116, 1
      %s118 = scalar_select %p115, %s116, %s117
      %p121 = pneg %p115
      %p122 = scmp.eq.s32.totalorder %s17, 1
      %p123 = por %p121, %p122
      %p124 = scmp.ne.s32.totalorder %s116, %s119
      %p125 = scmp.eq.s32.totalorder %s17, 0
      %p126 = por %p124, %p125
      %p127 = scmp.ne.s32.totalorder %s116, %s119
      %p128 = scmp.eq.s32.totalorder %s22, 1
      %p129 = por %p127, %p128
      %p130 = scmp.ne.s32.totalorder %s119, %s120
      %p131 = scmp.eq.s32.totalorder %s22, 0
      %p132 = por %p130, %p131
      %p133 = scmp.ne.s32.totalorder %s119, %s120
      %p134 = scmp.eq.s32.totalorder %s23, 1
      %p135 = por %p133, %p134
      %p137 = scmp.ne.s32.totalorder %s120, %s136
      %p138 = scmp.eq.s32.totalorder %s23, 0
      %p139 = por %p137, %p138
      %p140 = scmp.le.s32.totalorder 1, %s17
      %p141 = scmp.lt.s32.totalorder %s17, 3
      %p142 = pnand %p140, %p141
      %p143 = pneg %p142
      // Predicated region
      $region9: #{tpu_custom_call.1} parent=5 // pred_check
        _
      $region10: #{tpu_custom_call.1} parent=5 // pred_check_branch
        %145 = sbr.rel (%p142) target = $region12
      $region11: #{tpu_custom_call.1} parent=5 // pred_region
        %s146 = ssub.s32 %s17, 1
        // Predicated region
        $region13: #{tpu_custom_call.1} parent=11 // pred_check
          %p147 = pneg %p64
        $region14: #{tpu_custom_call.1} parent=11 // pred_check_branch
          %149 = sbr.rel (%p147) target = $region16
        $region15: #{tpu_custom_call.1} parent=11 // pred_region
          %s151 = ssub.s32 256, 256
          %152 = vsyncadd [#allocation7], %s151
          %s153 = sshll.u32 [#allocation6], 4
          %s154 = int_to_ptr.vmem [resolvable:$true] %s153
          %159 = dma.hbm_to_vmem [thread:$0]  %s1, 256, %s154, [#allocation7], 64, 64, 4
        $region16: #{tpu_custom_call.1} parent=11 // pred_fallthru
          _
        // Predicated region
        $region17: #{tpu_custom_call.1} parent=11 // pred_check
          %p160 = pneg %p85
        $region18: #{tpu_custom_call.1} parent=11 // pred_check_branch
          %162 = sbr.rel (%p160) target = $region20
        $region19: #{tpu_custom_call.1} parent=11 // pred_region
          %s164 = ssub.s32 256, 256
          %165 = vsyncadd [#allocation7], %s164
          %s166 = sshll.u32 [#allocation8], 4
          %s167 = int_to_ptr.vmem [resolvable:$true] %s166
          %172 = dma.hbm_to_vmem [thread:$0]  %s2, 256, %s167, [#allocation7], 64, 64, 4
        $region20: #{tpu_custom_call.1} parent=11 // pred_fallthru
          _
        // Predicated region
        $region21: #{tpu_custom_call.1} parent=11 // pred_check
          %p173 = pneg %p106
        $region22: #{tpu_custom_call.1} parent=11 // pred_check_branch
          %175 = sbr.rel (%p173) target = $region24
        $region23: #{tpu_custom_call.1} parent=11 // pred_region
          _
        $region24: #{tpu_custom_call.1} parent=11 // pred_fallthru
          _
      $region12: #{tpu_custom_call.1} parent=5 // pred_fallthru
        _
      %p176 = scmp.lt.s32.totalorder %s17, 2
      // Predicated region
      $region25: #{tpu_custom_call.1} parent=5 // pred_check
        %p177 = pneg %p176
      $region26: #{tpu_custom_call.1} parent=5 // pred_check_branch
        %179 = sbr.rel (%p177) target = $region28
      $region27: #{tpu_custom_call.1} parent=5 // pred_region
        // Predicated region
        $region29: #{tpu_custom_call.1} parent=27 // pred_check
          %p180 = pneg %p37
        $region30: #{tpu_custom_call.1} parent=27 // pred_check_branch
          %182 = sbr.rel (%p180) target = $region32
        $region31: #{tpu_custom_call.1} parent=27 // pred_region
          %s183 = sand.u32 %s27, 1
          %s184 = scalar_lea.sflag [#allocation4], %s183
          %s185 = sand.u32 %s27, 1
          %s186 = smul.addr %s185, 4
          %s187 = scalar_lea.vmem [#allocation3], %s186
          %s189 = ssub.s32 64, 64
          %190 = vsyncadd %s184, %s189
          %s191 = smul.addr %s17, 64
          %s192 = scalar_lea.hbm %s0, %s191
          %s194 = sshll.u32 %s187, 4
          %s195 = int_to_ptr.vmem [resolvable:$true] %s194
          %197 = dma.hbm_to_vmem [thread:$0]  %s192, 64, %s195, %s184
        $region32: #{tpu_custom_call.1} parent=27 // pred_fallthru
          _
      $region28: #{tpu_custom_call.1} parent=5 // pred_fallthru
        _
      %p198 = scmp.le.s32.totalorder 1, %s17
      %p199 = scmp.lt.s32.totalorder %s17, 3
      %p200 = pnand %p198, %p199
      %p201 = pneg %p200
      // Predicated region
      $region33: #{tpu_custom_call.1} parent=5 // pred_check
        _
      $region34: #{tpu_custom_call.1} parent=5 // pred_check_branch
        %203 = sbr.rel (%p200) target = $region36
      $region35: #{tpu_custom_call.1} parent=5 // pred_region
        %s204 = ssub.s32 %s17, 1
        %s205 = sand.u32 %s30, 1
        %s206 = scalar_lea.sflag [#allocation4], %s205
        %s207 = sand.u32 %s30, 1
        %s208 = smul.addr %s207, 4
        %s209 = scalar_lea.vmem [#allocation3], %s208
        // Predicated region
        $region37: #{tpu_custom_call.1} parent=35 // pred_check
          %p210 = pneg %p43
        $region38: #{tpu_custom_call.1} parent=35 // pred_check_branch
          %212 = sbr.rel (%p210) target = $region40
        $region39: #{tpu_custom_call.1} parent=35 // pred_region
          %213 = dma.done %s206, 64
        $region40: #{tpu_custom_call.1} parent=35 // pred_fallthru
          _
        // Predicated region
        $region41: #{tpu_custom_call.1} parent=35 // pred_check
          %p214 = pneg %p64
        $region42: #{tpu_custom_call.1} parent=35 // pred_check_branch
          %216 = sbr.rel (%p214) target = $region44
        $region43: #{tpu_custom_call.1} parent=35 // pred_region
          %217 = dma.done [#allocation7], 256
        $region44: #{tpu_custom_call.1} parent=35 // pred_fallthru
          _
        // Predicated region
        $region45: #{tpu_custom_call.1} parent=35 // pred_check
          %p218 = pneg %p85
        $region46: #{tpu_custom_call.1} parent=35 // pred_check_branch
          %220 = sbr.rel (%p218) target = $region48
        $region47: #{tpu_custom_call.1} parent=35 // pred_region
          %221 = dma.done [#allocation7], 256
        $region48: #{tpu_custom_call.1} parent=35 // pred_fallthru
          _
        %s222 = sand.u32 %s30, 1
        %s223 = scalar_lea.sflag [#allocation4], %s222
        %s224 = sand.u32 %s30, 1
        %s225 = smul.addr %s224, 4
        %s226 = scalar_lea.vmem [#allocation3], %s225
        %p227 = pneg %p43
        %p228 = pneg %p40
        %p229 = pneg %p64
        %p230 = pneg %p61
        %p231 = pneg %p85
        %p232 = pneg %p82
        %p233 = pneg %p106
        %p234 = pneg %p103
        %p235 = pneg %p132
        %p236 = pneg %p129
        %s237 = sand.u32 %s119, 1
        %s238 = scalar_lea.sflag [#allocation5], %s237
        %s239 = sand.u32 %s119, 1
        %s240 = smul.addr %s239, 8
        %s241 = scalar_lea.vmem [#allocation9], %s240
        %v243 = vld [vmem:[%s209] sm:$0xf]
        %v244 = vld [vmem:[#allocation6] sm:$0xf]
        %v245 = vld [vmem:[#allocation6 + $0x4] sm:$0xf]
        %v246 = vld [vmem:[#allocation6 + $0x8] sm:$0xf]
        %v247 = vld [vmem:[#allocation6 + $0xc] sm:$0xf]
        %v252 = vunpack.c.l.b16 %v244
        %v253 = vunpack.c.l.b16 %v245
        %v254 = vunpack.c.l.b16 %v246
        %v255 = vunpack.c.l.b16 %v247
        %v256 = vpack.c.b16 %v253, %v252
        %v257 = vpack.c.b16 %v255, %v254
        %vm260 = vcmask 261120
        %v262 = vsel %vm260, %v243, 0
        %264 = vmatprep.subr.bf16.mxu0 0
        %265 = vmatpush1.bf16.msra.mxu0 %v256
        %266 = vmatprep.subr.bf16.mxu0 0
        %267 = vmatpush1.bf16.msra.mxu0 %v257
        %268 = vmatprep.subr.bf16.mxu0 0
        %269 = vmatpush1.bf16.msra.mxu0 0
        %270 = vmatprep.subr.bf16.mxu0 0
        %271 = vmatpush1.bf16.msra.mxu0 0
        %272 = vmatprep.subr.bf16.mxu0 0
        %273 = vmatpush1.bf16.msra.mxu0 0
        %274 = vmatprep.subr.bf16.mxu0 0
        %275 = vmatpush1.bf16.msra.mxu0 0
        %276 = vmatprep.subr.bf16.mxu0 0
        %277 = vmatpush1.bf16.msra.mxu0 0
        %278 = vmatprep.subr.bf16.mxu0 0
        %279 = vmatpush1.bf16.msra.mxu0 0
        %280 = vmatprep.subr.bf16.mxu0 0
        %281 = vmatpush1.bf16.msra.mxu0 0
        %282 = vmatprep.subr.bf16.mxu0 0
        %283 = vmatpush1.bf16.msra.mxu0 0
        %284 = vmatprep.subr.bf16.mxu0 0
        %285 = vmatpush1.bf16.msra.mxu0 0
        %286 = vmatprep.subr.bf16.mxu0 0
        %287 = vmatpush1.bf16.msra.mxu0 0
        %288 = vmatprep.subr.bf16.mxu0 0
        %289 = vmatpush1.bf16.msra.mxu0 0
        %290 = vmatprep.subr.bf16.mxu0 0
        %291 = vmatpush1.bf16.msra.mxu0 0
        %292 = vmatprep.subr.bf16.mxu0 0
        %293 = vmatpush1.bf16.msra.mxu0 0
        %294 = vmatprep.subr.bf16.mxu0 0
        %295 = vmatpush1.bf16.msra.mxu0 0
        %296 = vmatprep.mubr.bf16.mxu0 0
        %297 = vmatmul.mubr.bf16.gmra.mrb[0].mxu0 %v262
        %v298 = vpop.f32.mrb[0].mxu0
        %v299 = vadd.f32 0.0, %v298
        %v300 = vpop.f32.mrb[0].mxu0
        %v301 = vpop.f32.mrb[0].mxu0
        %v302 = vpop.f32.mrb[0].mxu0
        %303 = vdwg.mxu0
        %v304 = vpack.c.bf16 %v299, %v299
        %306 = vrot.lane.b32.xlu0 %v304, 96
        %v307 = vpop.permute.xlu0 %306
        %vm308 = vcmask 64512
        %v310 = vsel %vm308, %v304, 0
        %v313 = vsel %vm308, %v307, 0
        %315 = vmatprep.subr.bf16.mxu0 0
        %316 = vmatpush1.bf16.xpose.msra.mxu0 %v313
        %317 = vmatprep.subr.bf16.mxu0 0
        %318 = vmatpush1.bf16.xpose.msra.mxu0 0
        %319 = vmatprep.subr.bf16.mxu0 0
        %320 = vmatpush1.bf16.xpose.msra.mxu0 0
        %321 = vmatprep.subr.bf16.mxu0 0
        %322 = vmatpush1.bf16.xpose.msra.mxu0 0
        %323 = vmatprep.subr.bf16.mxu0 0
        %324 = vmatpush1.bf16.xpose.msra.mxu0 0
        %325 = vmatprep.subr.bf16.mxu0 0
        %326 = vmatpush1.bf16.xpose.msra.mxu0 0
        %327 = vmatprep.subr.bf16.mxu0 0
        %328 = vmatpush1.bf16.xpose.msra.mxu0 0
        %329 = vmatprep.subr.bf16.mxu0 0
        %330 = vmatpush1.bf16.xpose.msra.mxu0 0
        %331 = vmatprep.subr.bf16.mxu0 0
        %332 = vmatpush1.bf16.xpose.msra.mxu0 0
        %333 = vmatprep.subr.bf16.mxu0 0
        %334 = vmatpush1.bf16.xpose.msra.mxu0 0
        %335 = vmatprep.subr.bf16.mxu0 0
        %336 = vmatpush1.bf16.xpose.msra.mxu0 0
        %337 = vmatprep.subr.bf16.mxu0 0
        %338 = vmatpush1.bf16.xpose.msra.mxu0 0
        %339 = vmatprep.subr.bf16.mxu0 0
        %340 = vmatpush1.bf16.xpose.msra.mxu0 0
        %341 = vmatprep.subr.bf16.mxu0 0
        %342 = vmatpush1.bf16.xpose.msra.mxu0 0
        %343 = vmatprep.subr.bf16.mxu0 0
        %344 = vmatpush1.bf16.xpose.msra.mxu0 0
        %345 = vmatprep.subr.bf16.mxu0 0
        %346 = vmatpush1.bf16.xpose.msra.mxu0 0
        %347 = vmatprep.mubr.bf16.mxu0 0
        %348 = vmatmul.mubr.bf16.gmra.mrb[0].mxu0 %v310
        %v349 = vpop.f32.mrb[0].mxu0
        %v350 = vadd.f32 0.0, %v349
        %v351 = vpop.f32.mrb[0].mxu0
        %v352 = vpop.f32.mrb[0].mxu0
        %v353 = vpop.f32.mrb[0].mxu0
        %354 = vdwg.mxu0
        %v355 = vsel %vm308, %v350, -inf
        %356 = vmax.xlane.f32.xlu0 %v355
        %v357 = vpop.xlane.xlu0 %356
        %v358 = vsub.f32 %v350, %v357
        %v359 = vmul.f32 %v358, 1.442695
        %v360 = vpow.pop %v359
        %v361 = vsel %vm308, %v360, 0.0
        %362 = vadd.xlane.f32.xlu0 %v361
        %v363 = vpop.xlane.xlu0 %362
        %v364 = vpack.c.bf16 %v360, %v360
        %365 = vrot.lane.b32.xlu0 %v304, 64
        %v366 = vpop.permute.xlu0 %365
        %v368 = vsel %vm308, %v364, 0
        %vm370 = vcmask 1043456
        %v372 = vsel %vm370, %v366, 0
        %374 = vmatprep.subr.bf16.mxu0 0
        %375 = vmatpush1.bf16.msra.mxu0 %v372
        %376 = vmatprep.subr.bf16.mxu0 0
        %377 = vmatpush1.bf16.msra.mxu0 0
        %378 = vmatprep.subr.bf16.mxu0 0
        %379 = vmatpush1.bf16.msra.mxu0 0
        %380 = vmatprep.subr.bf16.mxu0 0
        %381 = vmatpush1.bf16.msra.mxu0 0
        %382 = vmatprep.subr.bf16.mxu0 0
        %383 = vmatpush1.bf16.msra.mxu0 0
        %384 = vmatprep.subr.bf16.mxu0 0
        %385 = vmatpush1.bf16.msra.mxu0 0
        %386 = vmatprep.subr.bf16.mxu0 0
        %387 = vmatpush1.bf16.msra.mxu0 0
        %388 = vmatprep.subr.bf16.mxu0 0
        %389 = vmatpush1.bf16.msra.mxu0 0
        %390 = vmatprep.subr.bf16.mxu0 0
        %391 = vmatpush1.bf16.msra.mxu0 0
        %392 = vmatprep.subr.bf16.mxu0 0
        %393 = vmatpush1.bf16.msra.mxu0 0
        %394 = vmatprep.subr.bf16.mxu0 0
        %395 = vmatpush1.bf16.msra.mxu0 0
        %396 = vmatprep.subr.bf16.mxu0 0
        %397 = vmatpush1.bf16.msra.mxu0 0
        %398 = vmatprep.subr.bf16.mxu0 0
        %399 = vmatpush1.bf16.msra.mxu0 0
        %400 = vmatprep.subr.bf16.mxu0 0
        %401 = vmatpush1.bf16.msra.mxu0 0
        %402 = vmatprep.subr.bf16.mxu0 0
        %403 = vmatpush1.bf16.msra.mxu0 0
        %404 = vmatprep.subr.bf16.mxu0 0
        %405 = vmatpush1.bf16.msra.mxu0 0
        %406 = vmatprep.mubr.bf16.mxu0 0
        %407 = vmatmul.mubr.bf16.gmra.mrb[0].mxu0 %v368
        %v408 = vpop.f32.mrb[0].mxu0
        %v409 = vadd.f32 0.0, %v408
        %v410 = vpop.f32.mrb[0].mxu0
        %v411 = vpop.f32.mrb[0].mxu0
        %v412 = vpop.f32.mrb[0].mxu0
        %413 = vdwg.mxu0
        %v414 = vrcp.pop %v363
        %v415 = vmul.f32 %v409, %v414
        %v416 = vpack.c.bf16 %v415, %v415
        %vm417 = vcmask 60416
        %418 = vst.msk [vmem:[#allocation2] sm:$0xf] %vm417, %v416
        %419 = vrot.lane.b32.xlu0 %v304, 120
        %v420 = vpop.permute.xlu0 %419
        %421 = vrot.lane.b32.xlu0 %v304, 88
        %v422 = vpop.permute.xlu0 %421
        %v424 = vsel %vm308, %v420, 0
        %v427 = vsel %vm308, %v422, 0
        %429 = vmatprep.subr.bf16.mxu0 0
        %430 = vmatpush1.bf16.xpose.msra.mxu0 %v427
        %431 = vmatprep.subr.bf16.mxu0 0
        %432 = vmatpush1.bf16.xpose.msra.mxu0 0
        %433 = vmatprep.subr.bf16.mxu0 0
        %434 = vmatpush1.bf16.xpose.msra.mxu0 0
        %435 = vmatprep.subr.bf16.mxu0 0
        %436 = vmatpush1.bf16.xpose.msra.mxu0 0
        %437 = vmatprep.subr.bf16.mxu0 0
        %438 = vmatpush1.bf16.xpose.msra.mxu0 0
        %439 = vmatprep.subr.bf16.mxu0 0
        %440 = vmatpush1.bf16.xpose.msra.mxu0 0
        %441 = vmatprep.subr.bf16.mxu0 0
        %442 = vmatpush1.bf16.xpose.msra.mxu0 0
        %443 = vmatprep.subr.bf16.mxu0 0
        %444 = vmatpush1.bf16.xpose.msra.mxu0 0
        %445 = vmatprep.subr.bf16.mxu0 0
        %446 = vmatpush1.bf16.xpose.msra.mxu0 0
        %447 = vmatprep.subr.bf16.mxu0 0
        %448 = vmatpush1.bf16.xpose.msra.mxu0 0
        %449 = vmatprep.subr.bf16.mxu0 0
        %450 = vmatpush1.bf16.xpose.msra.mxu0 0
        %451 = vmatprep.subr.bf16.mxu0 0
        %452 = vmatpush1.bf16.xpose.msra.mxu0 0
        %453 = vmatprep.subr.bf16.mxu0 0
        %454 = vmatpush1.bf16.xpose.msra.mxu0 0
        %455 = vmatprep.subr.bf16.mxu0 0
        %456 = vmatpush1.bf16.xpose.msra.mxu0 0
        %457 = vmatprep.subr.bf16.mxu0 0
        %458 = vmatpush1.bf16.xpose.msra.mxu0 0
        %459 = vmatprep.subr.bf16.mxu0 0
        %460 = vmatpush1.bf16.xpose.msra.mxu0 0
        %461 = vmatprep.mubr.bf16.mxu0 0
        %462 = vmatmul.mubr.bf16.gmra.mrb[0].mxu0 %v424
        %v463 = vpop.f32.mrb[0].mxu0
        %v464 = vadd.f32 0.0, %v463
        %v465 = vpop.f32.mrb[0].mxu0
        %v466 = vpop.f32.mrb[0].mxu0
        %v467 = vpop.f32.mrb[0].mxu0
        %468 = vdwg.mxu0
        %v469 = vsel %vm308, %v464, -inf
        %470 = vmax.xlane.f32.xlu0 %v469
        %v471 = vpop.xlane.xlu0 %470
        %v472 = vsub.f32 %v464, %v471
        %v473 = vmul.f32 %v472, 1.442695
        %v474 = vpow.pop %v473
        %v475 = vsel %vm308, %v474, 0.0
        %476 = vadd.xlane.f32.xlu0 %v475
        %v477 = vpop.xlane.xlu0 %476
        %v478 = vpack.c.bf16 %v474, %v474
        %479 = vrot.lane.b32.xlu0 %v304, 56
        %v480 = vpop.permute.xlu0 %479
        %v482 = vsel %vm308, %v478, 0
        %v485 = vsel %vm370, %v480, 0
        %487 = vmatprep.subr.bf16.mxu0 0
        %488 = vmatpush1.bf16.msra.mxu0 %v485
        %489 = vmatprep.subr.bf16.mxu0 0
        %490 = vmatpush1.bf16.msra.mxu0 0
        %491 = vmatprep.subr.bf16.mxu0 0
        %492 = vmatpush1.bf16.msra.mxu0 0
        %493 = vmatprep.subr.bf16.mxu0 0
        %494 = vmatpush1.bf16.msra.mxu0 0
        %495 = vmatprep.subr.bf16.mxu0 0
        %496 = vmatpush1.bf16.msra.mxu0 0
        %497 = vmatprep.subr.bf16.mxu0 0
        %498 = vmatpush1.bf16.msra.mxu0 0
        %499 = vmatprep.subr.bf16.mxu0 0
        %500 = vmatpush1.bf16.msra.mxu0 0
        %501 = vmatprep.subr.bf16.mxu0 0
        %502 = vmatpush1.bf16.msra.mxu0 0
        %503 = vmatprep.subr.bf16.mxu0 0
        %504 = vmatpush1.bf16.msra.mxu0 0
        %505 = vmatprep.subr.bf16.mxu0 0
        %506 = vmatpush1.bf16.msra.mxu0 0
        %507 = vmatprep.subr.bf16.mxu0 0
        %508 = vmatpush1.bf16.msra.mxu0 0
        %509 = vmatprep.subr.bf16.mxu0 0
        %510 = vmatpush1.bf16.msra.mxu0 0
        %511 = vmatprep.subr.bf16.mxu0 0
        %512 = vmatpush1.bf16.msra.mxu0 0
        %513 = vmatprep.subr.bf16.mxu0 0
        %514 = vmatpush1.bf16.msra.mxu0 0
        %515 = vmatprep.subr.bf16.mxu0 0
        %516 = vmatpush1.bf16.msra.mxu0 0
        %517 = vmatprep.subr.bf16.mxu0 0
        %518 = vmatpush1.bf16.msra.mxu0 0
        %519 = vmatprep.mubr.bf16.mxu0 0
        %520 = vmatmul.mubr.bf16.gmra.mrb[0].mxu0 %v482
        %v521 = vpop.f32.mrb[0].mxu0
        %v522 = vadd.f32 0.0, %v521
        %v523 = vpop.f32.mrb[0].mxu0
        %v524 = vpop.f32.mrb[0].mxu0
        %v525 = vpop.f32.mrb[0].mxu0
        %526 = vdwg.mxu0
        %v527 = vrcp.pop %v477
        %v528 = vmul.f32 %v522, %v527
        %v529 = vpack.c.bf16 %v528, %v528
        %v531 = vunpack.c.l.b16 %v529
        %v532 = vpack.c.b16 %v531, %v531
        %533 = vrot.lane.b32.xlu0 %v532, 8
        %v534 = vpop.permute.xlu0 %533
        %vm536 = vcmask 126016
        %537 = vst.msk [vmem:[#allocation2] sm:$0xf] %vm536, %v534
        %538 = vrot.lane.b32.xlu0 %v304, 112
        %v539 = vpop.permute.xlu0 %538
        %540 = vrot.lane.b32.xlu0 %v304, 80
        %v541 = vpop.permute.xlu0 %540
        %v543 = vsel %vm308, %v539, 0
        %v546 = vsel %vm308, %v541, 0
        %548 = vmatprep.subr.bf16.mxu0 0
        %549 = vmatpush1.bf16.xpose.msra.mxu0 %v546
        %550 = vmatprep.subr.bf16.mxu0 0
        %551 = vmatpush1.bf16.xpose.msra.mxu0 0
        %552 = vmatprep.subr.bf16.mxu0 0
        %553 = vmatpush1.bf16.xpose.msra.mxu0 0
        %554 = vmatprep.subr.bf16.mxu0 0
        %555 = vmatpush1.bf16.xpose.msra.mxu0 0
        %556 = vmatprep.subr.bf16.mxu0 0
        %557 = vmatpush1.bf16.xpose.msra.mxu0 0
        %558 = vmatprep.subr.bf16.mxu0 0
        %559 = vmatpush1.bf16.xpose.msra.mxu0 0
        %560 = vmatprep.subr.bf16.mxu0 0
        %561 = vmatpush1.bf16.xpose.msra.mxu0 0
        %562 = vmatprep.subr.bf16.mxu0 0
        %563 = vmatpush1.bf16.xpose.msra.mxu0 0
        %564 = vmatprep.subr.bf16.mxu0 0
        %565 = vmatpush1.bf16.xpose.msra.mxu0 0
        %566 = vmatprep.subr.bf16.mxu0 0
        %567 = vmatpush1.bf16.xpose.msra.mxu0 0
        %568 = vmatprep.subr.bf16.mxu0 0
        %569 = vmatpush1.bf16.xpose.msra.mxu0 0
        %570 = vmatprep.subr.bf16.mxu0 0
        %571 = vmatpush1.bf16.xpose.msra.mxu0 0
        %572 = vmatprep.subr.bf16.mxu0 0
        %573 = vmatpush1.bf16.xpose.msra.mxu0 0
        %574 = vmatprep.subr.bf16.mxu0 0
        %575 = vmatpush1.bf16.xpose.msra.mxu0 0
        %576 = vmatprep.subr.bf16.mxu0 0
        %577 = vmatpush1.bf16.xpose.msra.mxu0 0
        %578 = vmatprep.subr.bf16.mxu0 0
        %579 = vmatpush1.bf16.xpose.msra.mxu0 0
        %580 = vmatprep.mubr.bf16.mxu0 0
        %581 = vmatmul.mubr.bf16.gmra.mrb[0].mxu0 %v543
        %v582 = vpop.f32.mrb[0].mxu0
        %v583 = vadd.f32 0.0, %v582
        %v584 = vpop.f32.mrb[0].mxu0
        %v585 = vpop.f32.mrb[0].mxu0
        %v586 = vpop.f32.mrb[0].mxu0
        %587 = vdwg.mxu0
        %v588 = vsel %vm308, %v583, -inf
        %589 = vmax.xlane.f32.xlu0 %v588
        %v590 = vpop.xlane.xlu0 %589
        %v591 = vsub.f32 %v583, %v590
        %v592 = vmul.f32 %v591, 1.442695
        %v593 = vpow.pop %v592
        %v594 = vsel %vm308, %v593, 0.0
        %595 = vadd.xlane.f32.xlu0 %v594
        %v596 = vpop.xlane.xlu0 %595
        %v597 = vpack.c.bf16 %v593, %v593
        %598 = vrot.lane.b32.xlu0 %v304, 48
        %v599 = vpop.permute.xlu0 %598
        %v601 = vsel %vm308, %v597, 0
        %v604 = vsel %vm370, %v599, 0
        %606 = vmatprep.subr.bf16.mxu0 0
        %607 = vmatpush1.bf16.msra.mxu0 %v604
        %608 = vmatprep.subr.bf16.mxu0 0
        %609 = vmatpush1.bf16.msra.mxu0 0
        %610 = vmatprep.subr.bf16.mxu0 0
        %611 = vmatpush1.bf16.msra.mxu0 0
        %612 = vmatprep.subr.bf16.mxu0 0
        %613 = vmatpush1.bf16.msra.mxu0 0
        %614 = vmatprep.subr.bf16.mxu0 0
        %615 = vmatpush1.bf16.msra.mxu0 0
        %616 = vmatprep.subr.bf16.mxu0 0
        %617 = vmatpush1.bf16.msra.mxu0 0
        %618 = vmatprep.subr.bf16.mxu0 0
        %619 = vmatpush1.bf16.msra.mxu0 0
        %620 = vmatprep.subr.bf16.mxu0 0
        %621 = vmatpush1.bf16.msra.mxu0 0
        %622 = vmatprep.subr.bf16.mxu0 0
        %623 = vmatpush1.bf16.msra.mxu0 0
        %624 = vmatprep.subr.bf16.mxu0 0
        %625 = vmatpush1.bf16.msra.mxu0 0
        %626 = vmatprep.subr.bf16.mxu0 0
        %627 = vmatpush1.bf16.msra.mxu0 0
        %628 = vmatprep.subr.bf16.mxu0 0
        %629 = vmatpush1.bf16.msra.mxu0 0
        %630 = vmatprep.subr.bf16.mxu0 0
        %631 = vmatpush1.bf16.msra.mxu0 0
        %632 = vmatprep.subr.bf16.mxu0 0
        %633 = vmatpush1.bf16.msra.mxu0 0
        %634 = vmatprep.subr.bf16.mxu0 0
        %635 = vmatpush1.bf16.msra.mxu0 0
        %636 = vmatprep.subr.bf16.mxu0 0
        %637 = vmatpush1.bf16.msra.mxu0 0
        %638 = vmatprep.mubr.bf16.mxu0 0
        %639 = vmatmul.mubr.bf16.gmra.mrb[0].mxu0 %v601
        %v640 = vpop.f32.mrb[0].mxu0
        %v641 = vadd.f32 0.0, %v640
        %v642 = vpop.f32.mrb[0].mxu0
        %v643 = vpop.f32.mrb[0].mxu0
        %v644 = vpop.f32.mrb[0].mxu0
        %645 = vdwg.mxu0
        %v646 = vrcp.pop %v596
        %v647 = vmul.f32 %v641, %v646
        %v648 = vpack.c.bf16 %v647, %v647
        %v650 = vunpack.c.l.b16 %v648
        %v651 = vpack.c.b16 %v650, %v650
        %652 = vrot.lane.b32.xlu0 %v651, 16
        %v653 = vpop.permute.xlu0 %652
        %vm655 = vcmask 191616
        %656 = vst.msk [vmem:[#allocation2] sm:$0xf] %vm655, %v653
        %657 = vrot.lane.b32.xlu0 %v304, 104
        %v658 = vpop.permute.xlu0 %657
        %659 = vrot.lane.b32.xlu0 %v304, 72
        %v660 = vpop.permute.xlu0 %659
        %v662 = vsel %vm308, %v658, 0
        %v665 = vsel %vm308, %v660, 0
        %667 = vmatprep.subr.bf16.mxu0 0
        %668 = vmatpush1.bf16.xpose.msra.mxu0 %v665
        %669 = vmatprep.subr.bf16.mxu0 0
        %670 = vmatpush1.bf16.xpose.msra.mxu0 0
        %671 = vmatprep.subr.bf16.mxu0 0
        %672 = vmatpush1.bf16.xpose.msra.mxu0 0
        %673 = vmatprep.subr.bf16.mxu0 0
        %674 = vmatpush1.bf16.xpose.msra.mxu0 0
        %675 = vmatprep.subr.bf16.mxu0 0
        %676 = vmatpush1.bf16.xpose.msra.mxu0 0
        %677 = vmatprep.subr.bf16.mxu0 0
        %678 = vmatpush1.bf16.xpose.msra.mxu0 0
        %679 = vmatprep.subr.bf16.mxu0 0
        %680 = vmatpush1.bf16.xpose.msra.mxu0 0
        %681 = vmatprep.subr.bf16.mxu0 0
        %682 = vmatpush1.bf16.xpose.msra.mxu0 0
        %683 = vmatprep.subr.bf16.mxu0 0
        %684 = vmatpush1.bf16.xpose.msra.mxu0 0
        %685 = vmatprep.subr.bf16.mxu0 0
        %686 = vmatpush1.bf16.xpose.msra.mxu0 0
        %687 = vmatprep.subr.bf16.mxu0 0
        %688 = vmatpush1.bf16.xpose.msra.mxu0 0
        %689 = vmatprep.subr.bf16.mxu0 0
        %690 = vmatpush1.bf16.xpose.msra.mxu0 0
        %691 = vmatprep.subr.bf16.mxu0 0
        %692 = vmatpush1.bf16.xpose.msra.mxu0 0
        %693 = vmatprep.subr.bf16.mxu0 0
        %694 = vmatpush1.bf16.xpose.msra.mxu0 0
        %695 = vmatprep.subr.bf16.mxu0 0
        %696 = vmatpush1.bf16.xpose.msra.mxu0 0
        %697 = vmatprep.subr.bf16.mxu0 0
        %698 = vmatpush1.bf16.xpose.msra.mxu0 0
        %699 = vmatprep.mubr.bf16.mxu0 0
        %700 = vmatmul.mubr.bf16.gmra.mrb[0].mxu0 %v662
        %v701 = vpop.f32.mrb[0].mxu0
        %v702 = vadd.f32 0.0, %v701
        %v703 = vpop.f32.mrb[0].mxu0
        %v704 = vpop.f32.mrb[0].mxu0
        %v705 = vpop.f32.mrb[0].mxu0
        %706 = vdwg.mxu0
        %v707 = vsel %vm308, %v702, -inf
        %708 = vmax.xlane.f32.xlu0 %v707
        %v709 = vpop.xlane.xlu0 %708
        %v710 = vsub.f32 %v702, %v709
        %v711 = vmul.f32 %v710, 1.442695
        %v712 = vpow.pop %v711
        %v713 = vsel %vm308, %v712, 0.0
        %714 = vadd.xlane.f32.xlu0 %v713
        %v715 = vpop.xlane.xlu0 %714
        %v716 = vpack.c.bf16 %v712, %v712
        %717 = vrot.lane.b32.xlu0 %v304, 40
        %v718 = vpop.permute.xlu0 %717
        %v720 = vsel %vm308, %v716, 0
        %v723 = vsel %vm370, %v718, 0
        %725 = vmatprep.subr.bf16.mxu0 0
        %726 = vmatpush1.bf16.msra.mxu0 %v723
        %727 = vmatprep.subr.bf16.mxu0 0
        %728 = vmatpush1.bf16.msra.mxu0 0
        %729 = vmatprep.subr.bf16.mxu0 0
        %730 = vmatpush1.bf16.msra.mxu0 0
        %731 = vmatprep.subr.bf16.mxu0 0
        %732 = vmatpush1.bf16.msra.mxu0 0
        %733 = vmatprep.subr.bf16.mxu0 0
        %734 = vmatpush1.bf16.msra.mxu0 0
        %735 = vmatprep.subr.bf16.mxu0 0
        %736 = vmatpush1.bf16.msra.mxu0 0
        %737 = vmatprep.subr.bf16.mxu0 0
        %738 = vmatpush1.bf16.msra.mxu0 0
        %739 = vmatprep.subr.bf16.mxu0 0
        %740 = vmatpush1.bf16.msra.mxu0 0
        %741 = vmatprep.subr.bf16.mxu0 0
        %742 = vmatpush1.bf16.msra.mxu0 0
        %743 = vmatprep.subr.bf16.mxu0 0
        %744 = vmatpush1.bf16.msra.mxu0 0
        %745 = vmatprep.subr.bf16.mxu0 0
        %746 = vmatpush1.bf16.msra.mxu0 0
        %747 = vmatprep.subr.bf16.mxu0 0
        %748 = vmatpush1.bf16.msra.mxu0 0
        %749 = vmatprep.subr.bf16.mxu0 0
        %750 = vmatpush1.bf16.msra.mxu0 0
        %751 = vmatprep.subr.bf16.mxu0 0
        %752 = vmatpush1.bf16.msra.mxu0 0
        %753 = vmatprep.subr.bf16.mxu0 0
        %754 = vmatpush1.bf16.msra.mxu0 0
        %755 = vmatprep.subr.bf16.mxu0 0
        %756 = vmatpush1.bf16.msra.mxu0 0
        %757 = vmatprep.mubr.bf16.mxu0 0
        %758 = vmatmul.mubr.bf16.gmra.mrb[0].mxu0 %v720
        %v759 = vpop.f32.mrb[0].mxu0
        %v760 = vadd.f32 0.0, %v759
        %v761 = vpop.f32.mrb[0].mxu0
        %v762 = vpop.f32.mrb[0].mxu0
        %v763 = vpop.f32.mrb[0].mxu0
        %764 = vdwg.mxu0
        %v765 = vrcp.pop %v715
        %v766 = vmul.f32 %v760, %v765
        %v767 = vpack.c.bf16 %v766, %v766
        %v769 = vunpack.c.l.b16 %v767
        %v770 = vpack.c.b16 %v769, %v769
        %771 = vrot.lane.b32.xlu0 %v770, 24
        %v772 = vpop.permute.xlu0 %771
        %vm774 = vcmask 257216
        %775 = vst.msk [vmem:[#allocation2] sm:$0xf] %vm774, %v772
        %v776 = vld [vmem:[#allocation2] sm:$0xf]
        %v777 = vld [vmem:[#allocation8] sm:$0xf]
        %v778 = vld [vmem:[#allocation8 + $0x4] sm:$0xf]
        %v779 = vld [vmem:[#allocation8 + $0x8] sm:$0xf]
        %v780 = vld [vmem:[#allocation8 + $0xc] sm:$0xf]
        %v781 = vld [vmem:[%s3] sm:$0x1]
        %v783 = vlaneseq
        %v784 = vshrl.u32 %v783, 7
        %v785 = vsub.s32 0, %v784
        %v786 = vrot.slane %v781, %v785
        %v792 = vunpack.c.l.b16 %v777
        %v793 = vunpack.c.l.b16 %v778
        %v794 = vunpack.c.l.b16 %v779
        %v795 = vunpack.c.l.b16 %v780
        %v796 = vpack.c.b16 %v793, %v792
        %v797 = vpack.c.b16 %v795, %v794
        %v801 = vsel %vm260, %v776, 0
        %803 = vmatprep.subr.bf16.mxu0 0
        %804 = vmatpush1.bf16.msra.mxu0 %v796
        %805 = vmatprep.subr.bf16.mxu0 0
        %806 = vmatpush1.bf16.msra.mxu0 %v797
        %807 = vmatprep.subr.bf16.mxu0 0
        %808 = vmatpush1.bf16.msra.mxu0 0
        %809 = vmatprep.subr.bf16.mxu0 0
        %810 = vmatpush1.bf16.msra.mxu0 0
        %811 = vmatprep.subr.bf16.mxu0 0
        %812 = vmatpush1.bf16.msra.mxu0 0
        %813 = vmatprep.subr.bf16.mxu0 0
        %814 = vmatpush1.bf16.msra.mxu0 0
        %815 = vmatprep.subr.bf16.mxu0 0
        %816 = vmatpush1.bf16.msra.mxu0 0
        %817 = vmatprep.subr.bf16.mxu0 0
        %818 = vmatpush1.bf16.msra.mxu0 0
        %819 = vmatprep.subr.bf16.mxu0 0
        %820 = vmatpush1.bf16.msra.mxu0 0
        %821 = vmatprep.subr.bf16.mxu0 0
        %822 = vmatpush1.bf16.msra.mxu0 0
        %823 = vmatprep.subr.bf16.mxu0 0
        %824 = vmatpush1.bf16.msra.mxu0 0
        %825 = vmatprep.subr.bf16.mxu0 0
        %826 = vmatpush1.bf16.msra.mxu0 0
        %827 = vmatprep.subr.bf16.mxu0 0
        %828 = vmatpush1.bf16.msra.mxu0 0
        %829 = vmatprep.subr.bf16.mxu0 0
        %830 = vmatpush1.bf16.msra.mxu0 0
        %831 = vmatprep.subr.bf16.mxu0 0
        %832 = vmatpush1.bf16.msra.mxu0 0
        %833 = vmatprep.subr.bf16.mxu0 0
        %834 = vmatpush1.bf16.msra.mxu0 0
        %835 = vmatprep.mubr.bf16.mxu0 0
        %836 = vmatmul.mubr.bf16.gmra.mrb[0].mxu0 %v801
        %v837 = vpop.f32.mrb[0].mxu0
        %v838 = vadd.f32 %v786, %v837
        %v839 = vpop.f32.mrb[0].mxu0
        %v840 = vpop.f32.mrb[0].mxu0
        %v841 = vpop.f32.mrb[0].mxu0
        %842 = vdwg.mxu0
        %843 = vst.msk [vmem:[%s241] sm:$0xff] %vm260, %v838
        %s844 = sand.u32 %s119, 1
        %s845 = scalar_lea.sflag [#allocation5], %s844
        %s846 = sand.u32 %s119, 1
        %s847 = smul.addr %s846, 8
        %s848 = scalar_lea.vmem [#allocation9], %s847
        // Predicated region
        $region49: #{tpu_custom_call.1} parent=35 // pred_check
          %p849 = pneg %p129
        $region50: #{tpu_custom_call.1} parent=35 // pred_check_branch
          %851 = sbr.rel (%p849) target = $region52
        $region51: #{tpu_custom_call.1} parent=35 // pred_region
          %s853 = ssub.s32 128, 128
          %854 = vsyncadd %s845, %s853
          %s855 = smul.addr %s22, 128
          %s856 = scalar_lea.hbm %s4, %s855
          %s858 = sshll.u32 %s848, 4
          %s859 = int_to_ptr.vmem [resolvable:$true] %s858
          %861 = dma.vmem_to_hbm [thread:$0]  %s859, 128, %s856, %s845
        $region52: #{tpu_custom_call.1} parent=35 // pred_fallthru
          _
      $region36: #{tpu_custom_call.1} parent=5 // pred_fallthru
        _
      %p862 = scmp.le.s32.totalorder 2, %s17
      // Predicated region
      $region53: #{tpu_custom_call.1} parent=5 // pred_check
        %p863 = pneg %p862
      $region54: #{tpu_custom_call.1} parent=5 // pred_check_branch
        %865 = sbr.rel (%p863) target = $region56
      $region55: #{tpu_custom_call.1} parent=5 // pred_region
        %s866 = ssub.s32 %s17, 2
        // Predicated region
        $region57: #{tpu_custom_call.1} parent=55 // pred_check
          %p867 = pneg %p135
        $region58: #{tpu_custom_call.1} parent=55 // pred_check_branch
          %869 = sbr.rel (%p867) target = $region60
        $region59: #{tpu_custom_call.1} parent=55 // pred_region
          %s870 = sand.u32 %s120, 1
          %s871 = scalar_lea.sflag [#allocation5], %s870
          %s872 = sand.u32 %s120, 1
          %s873 = smul.addr %s872, 8
          %s874 = scalar_lea.vmem [#allocation9], %s873
          %875 = dma.done %s871, 128
        $region60: #{tpu_custom_call.1} parent=55 // pred_fallthru
          _
      $region56: #{tpu_custom_call.1} parent=5 // pred_fallthru
        _
    $region6: #{tpu_custom_call.1} parent=1 // loop_footer
      %s21 = sadd.s32 1, %s17
    $region7: #{tpu_custom_call.1} parent=1 // loop_footer_branch
      %16 = sbr.rel target = $region3
    $region8: #{tpu_custom_call.1} parent=1 // loop_exit
      _
    %876 = vsyncpa [#allocation4], 1
    %s877 = scalar_lea.sflag [#allocation4], 1
    %878 = vsyncpa %s877, 1
    %879 = vsyncpa [#allocation7], 1
    %880 = vsyncpa [#allocation5], 1
    %s881 = scalar_lea.sflag [#allocation5], 1
    %882 = vsyncpa %s881, 1

// kernel: tpu_custom_call.1
$region0: #{tpu_custom_call.1}
  #allocation0 [shape = 'u32[]', space=smem, size = 0x4, offset = 0x4, fixed_abs, tag = 'smem constant byte address 0x4 - core index']
  #allocation1 [shape = 'u32[144,128]{1,0:T(1,128)}', space=vmem, size = 0x12000, scoped, tag = 'internal scratch']
  #allocation2 [shape = 'bf16[8,32]{1,0:T(8,128)(2,1)}', space=vmem, size = 0x800, scoped, tag = 'scratch operand']
  %s0 = inlined_call_operand.hbm [shape: bf16[2,8,32], index: 0, kind: input, shape index: {}]
  %s1 = inlined_call_operand.hbm [shape: bf16[32,96], index: 1, kind: input, shape index: {}]
  %s2 = inlined_call_operand.hbm [shape: bf16[32,32], index: 2, kind: input, shape index: {}]
  %s3 = inlined_call_operand.vmem [shape: f32[1,32], index: 3, kind: input, shape index: {}]
  %s4 = inlined_call_operand.hbm [shape: f32[2,8,32], index: 4, kind: output, shape index: {}]
  %s5 = sld [smem:[#allocation0]]
  $region61: #{tpu_custom_call.1} parent=0
    _
  %s7 = ssub.s32 1, %s5
  %s8 = scalar_select 0, %s7, %s5
  $region1: #{tpu_custom_call.1} parent=0
    #allocation3 [shape = 'u8[4096]{0}', space=vmem, size = 0x1000, scoped, tag = 'input window, operand 0']
    #allocation4 [shape = 's32[2]{0}', space=sflag, size = 0x8, scoped, tag = 'scoped memory for tpu_custom_call.1']
    #allocation5 [shape = 's32[2]{0}', space=sflag, size = 0x8, scoped, tag = 'scoped memory for tpu_custom_call.1']
    #allocation6 [shape = 'u8[8192]{0}', space=vmem, size = 0x2000, scoped, tag = 'input window, operand 1, single buffered']
    #allocation7 [shape = 's32[1]{0}', space=sflag, size = 0x4, scoped, tag = 'scoped memory for tpu_custom_call.1']
    #allocation8 [shape = 'u8[8192]{0}', space=vmem, size = 0x2000, scoped, tag = 'input window, operand 2, single buffered']
    #allocation9 [shape = 'u8[8192]{0}', space=vmem, size = 0x2000, scoped, tag = 'output window, operand 0']
    %9 = vsyncpa [#allocation4], 0
    %s10 = scalar_lea.sflag [#allocation4], 1
    %11 = vsyncpa %s10, 0
    %12 = vsyncpa [#allocation7], 0
    %13 = vsyncpa [#allocation5], 0
    %s14 = scalar_lea.sflag [#allocation5], 1
    %15 = vsyncpa %s14, 0
    loop: start=0, step=1, limit=4
    $region2: #{tpu_custom_call.1} parent=1 // loop_pre_header
      _
    $region3: #{tpu_custom_call.1} parent=1 // loop_header
      %s17 = sphi 0, %s21
      %p18 = scmp.ge.s32.totalorder %s17, 4
      %s27 = sphi 0, %s29
      %s30 = sphi 0, %s27
      %s31 = sphi 0, %s30
      %s47 = sphi 0, %s31
      %s51 = sphi 0, %s51
      %s53 = sphi 0, %s51
      %s54 = sphi 0, %s53
      %s68 = sphi 0, %s54
      %s72 = sphi 0, %s72
      %s74 = sphi 0, %s72
      %s75 = sphi 0, %s74
      %s89 = sphi 0, %s75
      %s93 = sphi 0, %s93
      %s95 = sphi 0, %s93
      %s96 = sphi 0, %s95
      %s110 = sphi 0, %s96
      %s116 = sphi 0, %s118
      %s119 = sphi 0, %s116
      %s120 = sphi 0, %s119
      %s136 = sphi 0, %s120
    $region4: #{tpu_custom_call.1} parent=1 // loop_header_branch
      %20 = sbr.rel (%p18) target = $region8
    $region5: #{tpu_custom_call.1} parent=1 // loop_body
      %s22 = ssub.s32 %s17, 1
      %s23 = ssub.s32 %s17, 2
      %s24 = sadd.s32 %s17, 1
      %s25 = ssub.s32 %s17, %s24
      %p26 = scmp.eq.s32.totalorder %s25, 0
      %s28 = sadd.s32 %s27, 1
      %s29 = scalar_select %p26, %s27, %s28
      %p32 = pneg %p26
      %p33 = scmp.eq.s32.totalorder %s17, 1
      %p34 = por %p32, %p33
      %p35 = scmp.ne.s32.totalorder %s27, %s30
      %p36 = scmp.eq.s32.totalorder %s17, 0
      %p37 = por %p35, %p36
      %p38 = scmp.ne.s32.totalorder %s27, %s30
      %p39 = scmp.eq.s32.totalorder %s22, 1
      %p40 = por %p38, %p39
      %p41 = scmp.ne.s32.totalorder %s30, %s31
      %p42 = scmp.eq.s32.totalorder %s22, 0
      %p43 = por %p41, %p42
      %p44 = scmp.ne.s32.totalorder %s30, %s31
      %p45 = scmp.eq.s32.totalorder %s23, 1
      %p46 = por %p44, %p45
      %p48 = scmp.ne.s32.totalorder %s31, %s47
      %p49 = scmp.eq.s32.totalorder %s23, 0
      %p50 = por %p48, %p49
      %s52 = sadd.s32 %s51, 1
      %p55 = scmp.eq.s32.totalorder %s17, 1
      %p56 = scmp.ne.s32.totalorder %s51, %s53
      %p57 = scmp.eq.s32.totalorder %s17, 0
      %p58 = por %p56, %p57
      %p59 = scmp.ne.s32.totalorder %s51, %s53
      %p60 = scmp.eq.s32.totalorder %s22, 1
      %p61 = por %p59, %p60
      %p62 = scmp.ne.s32.totalorder %s53, %s54
      %p63 = scmp.eq.s32.totalorder %s22, 0
      %p64 = por %p62, %p63
      %p65 = scmp.ne.s32.totalorder %s53, %s54
      %p66 = scmp.eq.s32.totalorder %s23, 1
      %p67 = por %p65, %p66
      %p69 = scmp.ne.s32.totalorder %s54, %s68
      %p70 = scmp.eq.s32.totalorder %s23, 0
      %p71 = por %p69, %p70
      %s73 = sadd.s32 %s72, 1
      %p76 = scmp.eq.s32.totalorder %s17, 1
      %p77 = scmp.ne.s32.totalorder %s72, %s74
      %p78 = scmp.eq.s32.totalorder %s17, 0
      %p79 = por %p77, %p78
      %p80 = scmp.ne.s32.totalorder %s72, %s74
      %p81 = scmp.eq.s32.totalorder %s22, 1
      %p82 = por %p80, %p81
      %p83 = scmp.ne.s32.totalorder %s74, %s75
      %p84 = scmp.eq.s32.totalorder %s22, 0
      %p85 = por %p83, %p84
      %p86 = scmp.ne.s32.totalorder %s74, %s75
      %p87 = scmp.eq.s32.totalorder %s23, 1
      %p88 = por %p86, %p87
      %p90 = scmp.ne.s32.totalorder %s75, %s89
      %p91 = scmp.eq.s32.totalorder %s23, 0
      %p92 = por %p90, %p91
      %s94 = sadd.s32 %s93, 1
      %p97 = scmp.eq.s32.totalorder %s17, 1
      %p98 = scmp.ne.s32.totalorder %s93, %s95
      %p99 = scmp.eq.s32.totalorder %s17, 0
      %p100 = por %p98, %p99
      %p101 = scmp.ne.s32.totalorder %s93, %s95
      %p102 = scmp.eq.s32.totalorder %s22, 1
      %p103 = por %p101, %p102
      %p104 = scmp.ne.s32.totalorder %s95, %s96
      %p105 = scmp.eq.s32.totalorder %s22, 0
      %p106 = por %p104, %p105
      %p107 = scmp.ne.s32.totalorder %s95, %s96
      %p108 = scmp.eq.s32.totalorder %s23, 1
      %p109 = por %p107, %p108
      %p111 = scmp.ne.s32.totalorder %s96, %s110
      %p112 = scmp.eq.s32.totalorder %s23, 0
      %p113 = por %p111, %p112
      %s114 = ssub.s32 %s17, %s24
      %p115 = scmp.eq.s32.totalorder %s114, 0
      %s117 = sadd.s32 %s116, 1
      %s118 = scalar_select %p115, %s116, %s117
      %p121 = pneg %p115
      %p122 = scmp.eq.s32.totalorder %s17, 1
      %p123 = por %p121, %p122
      %p124 = scmp.ne.s32.totalorder %s116, %s119
      %p125 = scmp.eq.s32.totalorder %s17, 0
      %p126 = por %p124, %p125
      %p127 = scmp.ne.s32.totalorder %s116, %s119
      %p128 = scmp.eq.s32.totalorder %s22, 1
      %p129 = por %p127, %p128
      %p130 = scmp.ne.s32.totalorder %s119, %s120
      %p131 = scmp.eq.s32.totalorder %s22, 0
      %p132 = por %p130, %p131
      %p133 = scmp.ne.s32.totalorder %s119, %s120
      %p134 = scmp.eq.s32.totalorder %s23, 1
      %p135 = por %p133, %p134
      %p137 = scmp.ne.s32.totalorder %s120, %s136
      %p138 = scmp.eq.s32.totalorder %s23, 0
      %p139 = por %p137, %p138
      %p140 = scmp.le.s32.totalorder 1, %s17
      %p141 = scmp.lt.s32.totalorder %s17, 3
      %p142 = pnand %p140, %p141
      %p143 = pneg %p142
      // Predicated region
      $region9: #{tpu_custom_call.1} parent=5 // pred_check
        _
      $region10: #{tpu_custom_call.1} parent=5 // pred_check_branch
        %145 = sbr.rel (%p142) target = $region12
      $region11: #{tpu_custom_call.1} parent=5 // pred_region
        %s146 = ssub.s32 %s17, 1
        // Predicated region
        $region13: #{tpu_custom_call.1} parent=11 // pred_check
          %p147 = pneg %p64
        $region14: #{tpu_custom_call.1} parent=11 // pred_check_branch
          %149 = sbr.rel (%p147) target = $region16
        $region15: #{tpu_custom_call.1} parent=11 // pred_region
          %s151 = ssub.s32 256, 256
          %152 = vsyncadd [#allocation7], %s151
          %s153 = sshll.u32 [#allocation6], 4
          %s154 = int_to_ptr.vmem [resolvable:$true] %s153
          %159 = dma.hbm_to_vmem [thread:$0]  %s1, 256, %s154, [#allocation7], 64, 64, 4
        $region16: #{tpu_custom_call.1} parent=11 // pred_fallthru
          _
        // Predicated region
        $region17: #{tpu_custom_call.1} parent=11 // pred_check
          %p160 = pneg %p85
        $region18: #{tpu_custom_call.1} parent=11 // pred_check_branch
          %162 = sbr.rel (%p160) target = $region20
        $region19: #{tpu_custom_call.1} parent=11 // pred_region
          %s164 = ssub.s32 256, 256
          %165 = vsyncadd [#allocation7], %s164
          %s166 = sshll.u32 [#allocation8], 4
          %s167 = int_to_ptr.vmem [resolvable:$true] %s166
          %172 = dma.hbm_to_vmem [thread:$0]  %s2, 256, %s167, [#allocation7], 64, 64, 4
        $region20: #{tpu_custom_call.1} parent=11 // pred_fallthru
          _
        // Predicated region
        $region21: #{tpu_custom_call.1} parent=11 // pred_check
          %p173 = pneg %p106
        $region22: #{tpu_custom_call.1} parent=11 // pred_check_branch
          %175 = sbr.rel (%p173) target = $region24
        $region23: #{tpu_custom_call.1} parent=11 // pred_region
          _
        $region24: #{tpu_custom_call.1} parent=11 // pred_fallthru
          _
      $region12: #{tpu_custom_call.1} parent=5 // pred_fallthru
        _
      %p176 = scmp.lt.s32.totalorder %s17, 2
      // Predicated region
      $region25: #{tpu_custom_call.1} parent=5 // pred_check
        %p177 = pneg %p176
      $region26: #{tpu_custom_call.1} parent=5 // pred_check_branch
        %179 = sbr.rel (%p177) target = $region28
      $region27: #{tpu_custom_call.1} parent=5 // pred_region
        // Predicated region
        $region29: #{tpu_custom_call.1} parent=27 // pred_check
          %p180 = pneg %p37
        $region30: #{tpu_custom_call.1} parent=27 // pred_check_branch
          %182 = sbr.rel (%p180) target = $region32
        $region31: #{tpu_custom_call.1} parent=27 // pred_region
          %s183 = sand.u32 %s27, 1
          %s184 = scalar_lea.sflag [#allocation4], %s183
          %s185 = sand.u32 %s27, 1
          %s186 = smul.addr %s185, 4
          %s187 = scalar_lea.vmem [#allocation3], %s186
          %s189 = ssub.s32 64, 64
          %190 = vsyncadd %s184, %s189
          %s191 = smul.addr %s17, 64
          %s192 = scalar_lea.hbm %s0, %s191
          %s194 = sshll.u32 %s187, 4
          %s195 = int_to_ptr.vmem [resolvable:$true] %s194
          %197 = dma.hbm_to_vmem [thread:$0]  %s192, 64, %s195, %s184
        $region32: #{tpu_custom_call.1} parent=27 // pred_fallthru
          _
      $region28: #{tpu_custom_call.1} parent=5 // pred_fallthru
        _
      %p198 = scmp.le.s32.totalorder 1, %s17
      %p199 = scmp.lt.s32.totalorder %s17, 3
      %p200 = pnand %p198, %p199
      %p201 = pneg %p200
      // Predicated region
      $region33: #{tpu_custom_call.1} parent=5 // pred_check
        _
      $region34: #{tpu_custom_call.1} parent=5 // pred_check_branch
        %203 = sbr.rel (%p200) target = $region36
      $region35: #{tpu_custom_call.1} parent=5 // pred_region
        %s204 = ssub.s32 %s17, 1
        %s205 = sand.u32 %s30, 1
        %s206 = scalar_lea.sflag [#allocation4], %s205
        %s207 = sand.u32 %s30, 1
        %s208 = smul.addr %s207, 4
        %s209 = scalar_lea.vmem [#allocation3], %s208
        // Predicated region
        $region37: #{tpu_custom_call.1} parent=35 // pred_check
          %p210 = pneg %p43
        $region38: #{tpu_custom_call.1} parent=35 // pred_check_branch
          %212 = sbr.rel (%p210) target = $region40
        $region39: #{tpu_custom_call.1} parent=35 // pred_region
          %213 = dma.done %s206, 64
        $region40: #{tpu_custom_call.1} parent=35 // pred_fallthru
          _
        // Predicated region
        $region41: #{tpu_custom_call.1} parent=35 // pred_check
          %p214 = pneg %p64
        $region42: #{tpu_custom_call.1} parent=35 // pred_check_branch
          %216 = sbr.rel (%p214) target = $region44
        $region43: #{tpu_custom_call.1} parent=35 // pred_region
          %217 = dma.done [#allocation7], 256
        $region44: #{tpu_custom_call.1} parent=35 // pred_fallthru
          _
        // Predicated region
        $region45: #{tpu_custom_call.1} parent=35 // pred_check
          %p218 = pneg %p85
        $region46: #{tpu_custom_call.1} parent=35 // pred_check_branch
          %220 = sbr.rel (%p218) target = $region48
        $region47: #{tpu_custom_call.1} parent=35 // pred_region
          %221 = dma.done [#allocation7], 256
        $region48: #{tpu_custom_call.1} parent=35 // pred_fallthru
          _
        %s222 = sand.u32 %s30, 1
        %s223 = scalar_lea.sflag [#allocation4], %s222
        %s224 = sand.u32 %s30, 1
        %s225 = smul.addr %s224, 4
        %s226 = scalar_lea.vmem [#allocation3], %s225
        %p227 = pneg %p43
        %p228 = pneg %p40
        %p229 = pneg %p64
        %p230 = pneg %p61
        %p231 = pneg %p85
        %p232 = pneg %p82
        %p233 = pneg %p106
        %p234 = pneg %p103
        %p235 = pneg %p132
        %p236 = pneg %p129
        %s237 = sand.u32 %s119, 1
        %s238 = scalar_lea.sflag [#allocation5], %s237
        %s239 = sand.u32 %s119, 1
        %s240 = smul.addr %s239, 8
        %s241 = scalar_lea.vmem [#allocation9], %s240
        %v243 = vld [vmem:[%s209] sm:$0xf]
        %v244 = vld [vmem:[#allocation6] sm:$0xf]
        %v245 = vld [vmem:[#allocation6 + $0x4] sm:$0xf]
        %v246 = vld [vmem:[#allocation6 + $0x8] sm:$0xf]
        %v247 = vld [vmem:[#allocation6 + $0xc] sm:$0xf]
        %v252 = vunpack.c.l.b16 %v244
        %v253 = vunpack.c.l.b16 %v245
        %v254 = vunpack.c.l.b16 %v246
        %v255 = vunpack.c.l.b16 %v247
        %v256 = vpack.c.b16 %v253, %v252
        %v257 = vpack.c.b16 %v255, %v254
        %vm260 = vcmask 261120
        %v262 = vsel %vm260, %v243, 0
        %264 = vmatprep.subr.bf16.mxu0 0
        %265 = vmatpush1.bf16.msra.mxu0 %v256
        %266 = vmatprep.subr.bf16.mxu0 0
        %267 = vmatpush1.bf16.msra.mxu0 %v257
        %268 = vmatprep.subr.bf16.mxu0 0
        %269 = vmatpush1.bf16.msra.mxu0 0
        %270 = vmatprep.subr.bf16.mxu0 0
        %271 = vmatpush1.bf16.msra.mxu0 0
        %272 = vmatprep.subr.bf16.mxu0 0
        %273 = vmatpush1.bf16.msra.mxu0 0
        %274 = vmatprep.subr.bf16.mxu0 0
        %275 = vmatpush1.bf16.msra.mxu0 0
        %276 = vmatprep.subr.bf16.mxu0 0
        %277 = vmatpush1.bf16.msra.mxu0 0
        %278 = vmatprep.subr.bf16.mxu0 0
        %279 = vmatpush1.bf16.msra.mxu0 0
        %280 = vmatprep.subr.bf16.mxu0 0
        %281 = vmatpush1.bf16.msra.mxu0 0
        %282 = vmatprep.subr.bf16.mxu0 0
        %283 = vmatpush1.bf16.msra.mxu0 0
        %284 = vmatprep.subr.bf16.mxu0 0
        %285 = vmatpush1.bf16.msra.mxu0 0
        %286 = vmatprep.subr.bf16.mxu0 0
        %287 = vmatpush1.bf16.msra.mxu0 0
        %288 = vmatprep.subr.bf16.mxu0 0
        %289 = vmatpush1.bf16.msra.mxu0 0
        %290 = vmatprep.subr.bf16.mxu0 0
        %291 = vmatpush1.bf16.msra.mxu0 0
        %292 = vmatprep.subr.bf16.mxu0 0
        %293 = vmatpush1.bf16.msra.mxu0 0
        %294 = vmatprep.subr.bf16.mxu0 0
        %295 = vmatpush1.bf16.msra.mxu0 0
        %296 = vmatprep.mubr.bf16.mxu0 0
        %297 = vmatmul.mubr.bf16.gmra.mrb[0].mxu0 %v262
        %v298 = vpop.f32.mrb[0].mxu0
        %v299 = vadd.f32 0.0, %v298
        %v300 = vpop.f32.mrb[0].mxu0
        %v301 = vpop.f32.mrb[0].mxu0
        %v302 = vpop.f32.mrb[0].mxu0
        %303 = vdwg.mxu0
        %v304 = vpack.c.bf16 %v299, %v299
        %306 = vrot.lane.b32.xlu0 %v304, 96
        %v307 = vpop.permute.xlu0 %306
        %vm308 = vcmask 64512
        %v310 = vsel %vm308, %v304, 0
        %v313 = vsel %vm308, %v307, 0
        %315 = vmatprep.subr.bf16.mxu0 0
        %316 = vmatpush1.bf16.xpose.msra.mxu0 %v313
        %317 = vmatprep.subr.bf16.mxu0 0
        %318 = vmatpush1.bf16.xpose.msra.mxu0 0
        %319 = vmatprep.subr.bf16.mxu0 0
        %320 = vmatpush1.bf16.xpose.msra.mxu0 0
        %321 = vmatprep.subr.bf16.mxu0 0
        %322 = vmatpush1.bf16.xpose.msra.mxu0 0
        %323 = vmatprep.subr.bf16.mxu0 0
        %324 = vmatpush1.bf16.xpose.msra.mxu0 0
        %325 = vmatprep.subr.bf16.mxu0 0
        %326 = vmatpush1.bf16.xpose.msra.mxu0 0
        %327 = vmatprep.subr.bf16.mxu0 0
        %328 = vmatpush1.bf16.xpose.msra.mxu0 0
        %329 = vmatprep.subr.bf16.mxu0 0
        %330 = vmatpush1.bf16.xpose.msra.mxu0 0
        %331 = vmatprep.subr.bf16.mxu0 0
        %332 = vmatpush1.bf16.xpose.msra.mxu0 0
        %333 = vmatprep.subr.bf16.mxu0 0
        %334 = vmatpush1.bf16.xpose.msra.mxu0 0
        %335 = vmatprep.subr.bf16.mxu0 0
        %336 = vmatpush1.bf16.xpose.msra.mxu0 0
        %337 = vmatprep.subr.bf16.mxu0 0
        %338 = vmatpush1.bf16.xpose.msra.mxu0 0
        %339 = vmatprep.subr.bf16.mxu0 0
        %340 = vmatpush1.bf16.xpose.msra.mxu0 0
        %341 = vmatprep.subr.bf16.mxu0 0
        %342 = vmatpush1.bf16.xpose.msra.mxu0 0
        %343 = vmatprep.subr.bf16.mxu0 0
        %344 = vmatpush1.bf16.xpose.msra.mxu0 0
        %345 = vmatprep.subr.bf16.mxu0 0
        %346 = vmatpush1.bf16.xpose.msra.mxu0 0
        %347 = vmatprep.mubr.bf16.mxu0 0
        %348 = vmatmul.mubr.bf16.gmra.mrb[0].mxu0 %v310
        %v349 = vpop.f32.mrb[0].mxu0
        %v350 = vadd.f32 0.0, %v349
        %v351 = vpop.f32.mrb[0].mxu0
        %v352 = vpop.f32.mrb[0].mxu0
        %v353 = vpop.f32.mrb[0].mxu0
        %354 = vdwg.mxu0
        %v355 = vsel %vm308, %v350, -inf
        %356 = vmax.xlane.f32.xlu0 %v355
        %v357 = vpop.xlane.xlu0 %356
        %v358 = vsub.f32 %v350, %v357
        %v359 = vmul.f32 %v358, 1.442695
        %v360 = vpow.pop %v359
        %v361 = vsel %vm308, %v360, 0.0
        %362 = vadd.xlane.f32.xlu0 %v361
        %v363 = vpop.xlane.xlu0 %362
        %v364 = vpack.c.bf16 %v360, %v360
        %365 = vrot.lane.b32.xlu0 %v304, 64
        %v366 = vpop.permute.xlu0 %365
        %v368 = vsel %vm308, %v364, 0
        %vm370 = vcmask 1043456
        %v372 = vsel %vm370, %v366, 0
        %374 = vmatprep.subr.bf16.mxu0 0
        %375 = vmatpush1.bf16.msra.mxu0 %v372
        %376 = vmatprep.subr.bf16.mxu0 0
        %377 = vmatpush1.bf16.msra.mxu0 0
        %378 = vmatprep.subr.bf16.mxu0 0
        %379 = vmatpush1.bf16.msra.mxu0 0
        %380 = vmatprep.subr.bf16.mxu0 0
        %381 = vmatpush1.bf16.msra.mxu0 0
        %382 = vmatprep.subr.bf16.mxu0 0
        %383 = vmatpush1.bf16.msra.mxu0 0
        %384 = vmatprep.subr.bf16.mxu0 0
        %385 = vmatpush1.bf16.msra.mxu0 0
        %386 = vmatprep.subr.bf16.mxu0 0
        %387 = vmatpush1.bf16.msra.mxu0 0
        %388 = vmatprep.subr.bf16.mxu0 0
        %389 = vmatpush1.bf16.msra.mxu0 0
        %390 = vmatprep.subr.bf16.mxu0 0
        %391 = vmatpush1.bf16.msra.mxu0 0
        %392 = vmatprep.subr.bf16.mxu0 0
        %393 = vmatpush1.bf16.msra.mxu0 0
        %394 = vmatprep.subr.bf16.mxu0 0
        %395 = vmatpush1.bf16.msra.mxu0 0
        %396 = vmatprep.subr.bf16.mxu0 0
        %397 = vmatpush1.bf16.msra.mxu0 0
        %398 = vmatprep.subr.bf16.mxu0 0
        %399 = vmatpush1.bf16.msra.mxu0 0
        %400 = vmatprep.subr.bf16.mxu0 0
        %401 = vmatpush1.bf16.msra.mxu0 0
        %402 = vmatprep.subr.bf16.mxu0 0
        %403 = vmatpush1.bf16.msra.mxu0 0
        %404 = vmatprep.subr.bf16.mxu0 0
        %405 = vmatpush1.bf16.msra.mxu0 0
        %406 = vmatprep.mubr.bf16.mxu0 0
        %407 = vmatmul.mubr.bf16.gmra.mrb[0].mxu0 %v368
        %v408 = vpop.f32.mrb[0].mxu0
        %v409 = vadd.f32 0.0, %v408
        %v410 = vpop.f32.mrb[0].mxu0
        %v411 = vpop.f32.mrb[0].mxu0
        %v412 = vpop.f32.mrb[0].mxu0
        %413 = vdwg.mxu0
        %v414 = vrcp.pop %v363
        %v415 = vmul.f32 %v409, %v414
        %v416 = vpack.c.bf16 %v415, %v415
        %vm417 = vcmask 60416
        %418 = vst.msk [vmem:[#allocation2] sm:$0xf] %vm417, %v416
        %419 = vrot.lane.b32.xlu0 %v304, 120
        %v420 = vpop.permute.xlu0 %419
        %421 = vrot.lane.b32.xlu0 %v304, 88
        %v422 = vpop.permute.xlu0 %421
        %v424 = vsel %vm308, %v420, 0
        %v427 = vsel %vm308, %v422, 0
        %429 = vmatprep.subr.bf16.mxu0 0
        %430 = vmatpush1.bf16.xpose.msra.mxu0 %v427
        %431 = vmatprep.subr.bf16.mxu0 0
        %432 = vmatpush1.bf16.xpose.msra.mxu0 0
        %433 = vmatprep.subr.bf16.mxu0 0
        %434 = vmatpush1.bf16.xpose.msra.mxu0 0
        %435 = vmatprep.subr.bf16.mxu0 0
        %436 = vmatpush1.bf16.xpose.msra.mxu0 0
        %437 = vmatprep.subr.bf16.mxu0 0
        %438 = vmatpush1.bf16.xpose.msra.mxu0 0
        %439 = vmatprep.subr.bf16.mxu0 0
        %440 = vmatpush1.bf16.xpose.msra.mxu0 0
        %441 = vmatprep.subr.bf16.mxu0 0
        %442 = vmatpush1.bf16.xpose.msra.mxu0 0
        %443 = vmatprep.subr.bf16.mxu0 0
        %444 = vmatpush1.bf16.xpose.msra.mxu0 0
        %445 = vmatprep.subr.bf16.mxu0 0
        %446 = vmatpush1.bf16.xpose.msra.mxu0 0
        %447 = vmatprep.subr.bf16.mxu0 0
        %448 = vmatpush1.bf16.xpose.msra.mxu0 0
        %449 = vmatprep.subr.bf16.mxu0 0
        %450 = vmatpush1.bf16.xpose.msra.mxu0 0
        %451 = vmatprep.subr.bf16.mxu0 0
        %452 = vmatpush1.bf16.xpose.msra.mxu0 0
        %453 = vmatprep.subr.bf16.mxu0 0
        %454 = vmatpush1.bf16.xpose.msra.mxu0 0
        %455 = vmatprep.subr.bf16.mxu0 0
        %456 = vmatpush1.bf16.xpose.msra.mxu0 0
        %457 = vmatprep.subr.bf16.mxu0 0
        %458 = vmatpush1.bf16.xpose.msra.mxu0 0
        %459 = vmatprep.subr.bf16.mxu0 0
        %460 = vmatpush1.bf16.xpose.msra.mxu0 0
        %461 = vmatprep.mubr.bf16.mxu0 0
        %462 = vmatmul.mubr.bf16.gmra.mrb[0].mxu0 %v424
        %v463 = vpop.f32.mrb[0].mxu0
        %v464 = vadd.f32 0.0, %v463
        %v465 = vpop.f32.mrb[0].mxu0
        %v466 = vpop.f32.mrb[0].mxu0
        %v467 = vpop.f32.mrb[0].mxu0
        %468 = vdwg.mxu0
        %v469 = vsel %vm308, %v464, -inf
        %470 = vmax.xlane.f32.xlu0 %v469
        %v471 = vpop.xlane.xlu0 %470
        %v472 = vsub.f32 %v464, %v471
        %v473 = vmul.f32 %v472, 1.442695
        %v474 = vpow.pop %v473
        %v475 = vsel %vm308, %v474, 0.0
        %476 = vadd.xlane.f32.xlu0 %v475
        %v477 = vpop.xlane.xlu0 %476
        %v478 = vpack.c.bf16 %v474, %v474
        %479 = vrot.lane.b32.xlu0 %v304, 56
        %v480 = vpop.permute.xlu0 %479
        %v482 = vsel %vm308, %v478, 0
        %v485 = vsel %vm370, %v480, 0
        %487 = vmatprep.subr.bf16.mxu0 0
        %488 = vmatpush1.bf16.msra.mxu0 %v485
        %489 = vmatprep.subr.bf16.mxu0 0
        %490 = vmatpush1.bf16.msra.mxu0 0
        %491 = vmatprep.subr.bf16.mxu0 0
        %492 = vmatpush1.bf16.msra.mxu0 0
        %493 = vmatprep.subr.bf16.mxu0 0
        %494 = vmatpush1.bf16.msra.mxu0 0
        %495 = vmatprep.subr.bf16.mxu0 0
        %496 = vmatpush1.bf16.msra.mxu0 0
        %497 = vmatprep.subr.bf16.mxu0 0
        %498 = vmatpush1.bf16.msra.mxu0 0
        %499 = vmatprep.subr.bf16.mxu0 0
        %500 = vmatpush1.bf16.msra.mxu0 0
        %501 = vmatprep.subr.bf16.mxu0 0
        %502 = vmatpush1.bf16.msra.mxu0 0
        %503 = vmatprep.subr.bf16.mxu0 0
        %504 = vmatpush1.bf16.msra.mxu0 0
        %505 = vmatprep.subr.bf16.mxu0 0
        %506 = vmatpush1.bf16.msra.mxu0 0
        %507 = vmatprep.subr.bf16.mxu0 0
        %508 = vmatpush1.bf16.msra.mxu0 0
        %509 = vmatprep.subr.bf16.mxu0 0
        %510 = vmatpush1.bf16.msra.mxu0 0
        %511 = vmatprep.subr.bf16.mxu0 0
        %512 = vmatpush1.bf16.msra.mxu0 0
        %513 = vmatprep.subr.bf16.mxu0 0
        %514 = vmatpush1.bf16.msra.mxu0 0
        %515 = vmatprep.subr.bf16.mxu0 0
        %516 = vmatpush1.bf16.msra.mxu0 0
        %517 = vmatprep.subr.bf16.mxu0 0
        %518 = vmatpush1.bf16.msra.mxu0 0
        %519 = vmatprep.mubr.bf16.mxu0 0
        %520 = vmatmul.mubr.bf16.gmra.mrb[0].mxu0 %v482
        %v521 = vpop.f32.mrb[0].mxu0
        %v522 = vadd.f32 0.0, %v521
        %v523 = vpop.f32.mrb[0].mxu0
        %v524 = vpop.f32.mrb[0].mxu0
        %v525 = vpop.f32.mrb[0].mxu0
        %526 = vdwg.mxu0
        %v527 = vrcp.pop %v477
        %v528 = vmul.f32 %v522, %v527
        %v529 = vpack.c.bf16 %v528, %v528
        %v531 = vunpack.c.l.b16 %v529
        %v532 = vpack.c.b16 %v531, %v531
        %533 = vrot.lane.b32.xlu0 %v532, 8
        %v534 = vpop.permute.xlu0 %533
        %vm536 = vcmask 126016
        %537 = vst.msk [vmem:[#allocation2] sm:$0xf] %vm536, %v534
        %538 = vrot.lane.b32.xlu0 %v304, 112
        %v539 = vpop.permute.xlu0 %538
        %540 = vrot.lane.b32.xlu0 %v304, 80
        %v541 = vpop.permute.xlu0 %540
        %v543 = vsel %vm308, %v539, 0
        %v546 = vsel %vm308, %v541, 0
        %548 = vmatprep.subr.bf16.mxu0 0
        %549 = vmatpush1.bf16.xpose.msra.mxu0 %v546
        %550 = vmatprep.subr.bf16.mxu0 0
        %551 = vmatpush1.bf16.xpose.msra.mxu0 0
        %552 = vmatprep.subr.bf16.mxu0 0
        %553 = vmatpush1.bf16.xpose.msra.mxu0 0
        %554 = vmatprep.subr.bf16.mxu0 0
        %555 = vmatpush1.bf16.xpose.msra.mxu0 0
        %556 = vmatprep.subr.bf16.mxu0 0
        %557 = vmatpush1.bf16.xpose.msra.mxu0 0
        %558 = vmatprep.subr.bf16.mxu0 0
        %559 = vmatpush1.bf16.xpose.msra.mxu0 0
        %560 = vmatprep.subr.bf16.mxu0 0
        %561 = vmatpush1.bf16.xpose.msra.mxu0 0
        %562 = vmatprep.subr.bf16.mxu0 0
        %563 = vmatpush1.bf16.xpose.msra.mxu0 0
        %564 = vmatprep.subr.bf16.mxu0 0
        %565 = vmatpush1.bf16.xpose.msra.mxu0 0
        %566 = vmatprep.subr.bf16.mxu0 0
        %567 = vmatpush1.bf16.xpose.msra.mxu0 0
        %568 = vmatprep.subr.bf16.mxu0 0
        %569 = vmatpush1.bf16.xpose.msra.mxu0 0
        %570 = vmatprep.subr.bf16.mxu0 0
        %571 = vmatpush1.bf16.xpose.msra.mxu0 0
        %572 = vmatprep.subr.bf16.mxu0 0
        %573 = vmatpush1.bf16.xpose.msra.mxu0 0
        %574 = vmatprep.subr.bf16.mxu0 0
        %575 = vmatpush1.bf16.xpose.msra.mxu0 0
        %576 = vmatprep.subr.bf16.mxu0 0
        %577 = vmatpush1.bf16.xpose.msra.mxu0 0
        %578 = vmatprep.subr.bf16.mxu0 0
        %579 = vmatpush1.bf16.xpose.msra.mxu0 0
        %580 = vmatprep.mubr.bf16.mxu0 0
        %581 = vmatmul.mubr.bf16.gmra.mrb[0].mxu0 %v543
        %v582 = vpop.f32.mrb[0].mxu0
        %v583 = vadd.f32 0.0, %v582
        %v584 = vpop.f32.mrb[0].mxu0
        %v585 = vpop.f32.mrb[0].mxu0
        %v586 = vpop.f32.mrb[0].mxu0
        %587 = vdwg.mxu0
        %v588 = vsel %vm308, %v583, -inf
        %589 = vmax.xlane.f32.xlu0 %v588
        %v590 = vpop.xlane.xlu0 %589
        %v591 = vsub.f32 %v583, %v590
        %v592 = vmul.f32 %v591, 1.442695
        %v593 = vpow.pop %v592
        %v594 = vsel %vm308, %v593, 0.0
        %595 = vadd.xlane.f32.xlu0 %v594
        %v596 = vpop.xlane.xlu0 %595
        %v597 = vpack.c.bf16 %v593, %v593
        %598 = vrot.lane.b32.xlu0 %v304, 48
        %v599 = vpop.permute.xlu0 %598
        %v601 = vsel %vm308, %v597, 0
        %v604 = vsel %vm370, %v599, 0
        %606 = vmatprep.subr.bf16.mxu0 0
        %607 = vmatpush1.bf16.msra.mxu0 %v604
        %608 = vmatprep.subr.bf16.mxu0 0
        %609 = vmatpush1.bf16.msra.mxu0 0
        %610 = vmatprep.subr.bf16.mxu0 0
        %611 = vmatpush1.bf16.msra.mxu0 0
        %612 = vmatprep.subr.bf16.mxu0 0
        %613 = vmatpush1.bf16.msra.mxu0 0
        %614 = vmatprep.subr.bf16.mxu0 0
        %615 = vmatpush1.bf16.msra.mxu0 0
        %616 = vmatprep.subr.bf16.mxu0 0
        %617 = vmatpush1.bf16.msra.mxu0 0
        %618 = vmatprep.subr.bf16.mxu0 0
        %619 = vmatpush1.bf16.msra.mxu0 0
        %620 = vmatprep.subr.bf16.mxu0 0
        %621 = vmatpush1.bf16.msra.mxu0 0
        %622 = vmatprep.subr.bf16.mxu0 0
        %623 = vmatpush1.bf16.msra.mxu0 0
        %624 = vmatprep.subr.bf16.mxu0 0
        %625 = vmatpush1.bf16.msra.mxu0 0
        %626 = vmatprep.subr.bf16.mxu0 0
        %627 = vmatpush1.bf16.msra.mxu0 0
        %628 = vmatprep.subr.bf16.mxu0 0
        %629 = vmatpush1.bf16.msra.mxu0 0
        %630 = vmatprep.subr.bf16.mxu0 0
        %631 = vmatpush1.bf16.msra.mxu0 0
        %632 = vmatprep.subr.bf16.mxu0 0
        %633 = vmatpush1.bf16.msra.mxu0 0
        %634 = vmatprep.subr.bf16.mxu0 0
        %635 = vmatpush1.bf16.msra.mxu0 0
        %636 = vmatprep.subr.bf16.mxu0 0
        %637 = vmatpush1.bf16.msra.mxu0 0
        %638 = vmatprep.mubr.bf16.mxu0 0
        %639 = vmatmul.mubr.bf16.gmra.mrb[0].mxu0 %v601
        %v640 = vpop.f32.mrb[0].mxu0
        %v641 = vadd.f32 0.0, %v640
        %v642 = vpop.f32.mrb[0].mxu0
        %v643 = vpop.f32.mrb[0].mxu0
        %v644 = vpop.f32.mrb[0].mxu0
        %645 = vdwg.mxu0
        %v646 = vrcp.pop %v596
        %v647 = vmul.f32 %v641, %v646
        %v648 = vpack.c.bf16 %v647, %v647
        %v650 = vunpack.c.l.b16 %v648
        %v651 = vpack.c.b16 %v650, %v650
        %652 = vrot.lane.b32.xlu0 %v651, 16
        %v653 = vpop.permute.xlu0 %652
        %vm655 = vcmask 191616
        %656 = vst.msk [vmem:[#allocation2] sm:$0xf] %vm655, %v653
        %657 = vrot.lane.b32.xlu0 %v304, 104
        %v658 = vpop.permute.xlu0 %657
        %659 = vrot.lane.b32.xlu0 %v304, 72
        %v660 = vpop.permute.xlu0 %659
        %v662 = vsel %vm308, %v658, 0
        %v665 = vsel %vm308, %v660, 0
        %667 = vmatprep.subr.bf16.mxu0 0
        %668 = vmatpush1.bf16.xpose.msra.mxu0 %v665
        %669 = vmatprep.subr.bf16.mxu0 0
        %670 = vmatpush1.bf16.xpose.msra.mxu0 0
        %671 = vmatprep.subr.bf16.mxu0 0
        %672 = vmatpush1.bf16.xpose.msra.mxu0 0
        %673 = vmatprep.subr.bf16.mxu0 0
        %674 = vmatpush1.bf16.xpose.msra.mxu0 0
        %675 = vmatprep.subr.bf16.mxu0 0
        %676 = vmatpush1.bf16.xpose.msra.mxu0 0
        %677 = vmatprep.subr.bf16.mxu0 0
        %678 = vmatpush1.bf16.xpose.msra.mxu0 0
        %679 = vmatprep.subr.bf16.mxu0 0
        %680 = vmatpush1.bf16.xpose.msra.mxu0 0
        %681 = vmatprep.subr.bf16.mxu0 0
        %682 = vmatpush1.bf16.xpose.msra.mxu0 0
        %683 = vmatprep.subr.bf16.mxu0 0
        %684 = vmatpush1.bf16.xpose.msra.mxu0 0
        %685 = vmatprep.subr.bf16.mxu0 0
        %686 = vmatpush1.bf16.xpose.msra.mxu0 0
        %687 = vmatprep.subr.bf16.mxu0 0
        %688 = vmatpush1.bf16.xpose.msra.mxu0 0
        %689 = vmatprep.subr.bf16.mxu0 0
        %690 = vmatpush1.bf16.xpose.msra.mxu0 0
        %691 = vmatprep.subr.bf16.mxu0 0
        %692 = vmatpush1.bf16.xpose.msra.mxu0 0
        %693 = vmatprep.subr.bf16.mxu0 0
        %694 = vmatpush1.bf16.xpose.msra.mxu0 0
        %695 = vmatprep.subr.bf16.mxu0 0
        %696 = vmatpush1.bf16.xpose.msra.mxu0 0
        %697 = vmatprep.subr.bf16.mxu0 0
        %698 = vmatpush1.bf16.xpose.msra.mxu0 0
        %699 = vmatprep.mubr.bf16.mxu0 0
        %700 = vmatmul.mubr.bf16.gmra.mrb[0].mxu0 %v662
        %v701 = vpop.f32.mrb[0].mxu0
        %v702 = vadd.f32 0.0, %v701
        %v703 = vpop.f32.mrb[0].mxu0
        %v704 = vpop.f32.mrb[0].mxu0
        %v705 = vpop.f32.mrb[0].mxu0
        %706 = vdwg.mxu0
        %v707 = vsel %vm308, %v702, -inf
        %708 = vmax.xlane.f32.xlu0 %v707
        %v709 = vpop.xlane.xlu0 %708
        %v710 = vsub.f32 %v702, %v709
        %v711 = vmul.f32 %v710, 1.442695
        %v712 = vpow.pop %v711
        %v713 = vsel %vm308, %v712, 0.0
        %714 = vadd.xlane.f32.xlu0 %v713
        %v715 = vpop.xlane.xlu0 %714
        %v716 = vpack.c.bf16 %v712, %v712
        %717 = vrot.lane.b32.xlu0 %v304, 40
        %v718 = vpop.permute.xlu0 %717
        %v720 = vsel %vm308, %v716, 0
        %v723 = vsel %vm370, %v718, 0
        %725 = vmatprep.subr.bf16.mxu0 0
        %726 = vmatpush1.bf16.msra.mxu0 %v723
        %727 = vmatprep.subr.bf16.mxu0 0
        %728 = vmatpush1.bf16.msra.mxu0 0
        %729 = vmatprep.subr.bf16.mxu0 0
        %730 = vmatpush1.bf16.msra.mxu0 0
        %731 = vmatprep.subr.bf16.mxu0 0
        %732 = vmatpush1.bf16.msra.mxu0 0
        %733 = vmatprep.subr.bf16.mxu0 0
        %734 = vmatpush1.bf16.msra.mxu0 0
        %735 = vmatprep.subr.bf16.mxu0 0
        %736 = vmatpush1.bf16.msra.mxu0 0
        %737 = vmatprep.subr.bf16.mxu0 0
        %738 = vmatpush1.bf16.msra.mxu0 0
        %739 = vmatprep.subr.bf16.mxu0 0
        %740 = vmatpush1.bf16.msra.mxu0 0
        %741 = vmatprep.subr.bf16.mxu0 0
        %742 = vmatpush1.bf16.msra.mxu0 0
        %743 = vmatprep.subr.bf16.mxu0 0
        %744 = vmatpush1.bf16.msra.mxu0 0
        %745 = vmatprep.subr.bf16.mxu0 0
        %746 = vmatpush1.bf16.msra.mxu0 0
        %747 = vmatprep.subr.bf16.mxu0 0
        %748 = vmatpush1.bf16.msra.mxu0 0
        %749 = vmatprep.subr.bf16.mxu0 0
        %750 = vmatpush1.bf16.msra.mxu0 0
        %751 = vmatprep.subr.bf16.mxu0 0
        %752 = vmatpush1.bf16.msra.mxu0 0
        %753 = vmatprep.subr.bf16.mxu0 0
        %754 = vmatpush1.bf16.msra.mxu0 0
        %755 = vmatprep.subr.bf16.mxu0 0
        %756 = vmatpush1.bf16.msra.mxu0 0
        %757 = vmatprep.mubr.bf16.mxu0 0
        %758 = vmatmul.mubr.bf16.gmra.mrb[0].mxu0 %v720
        %v759 = vpop.f32.mrb[0].mxu0
        %v760 = vadd.f32 0.0, %v759
        %v761 = vpop.f32.mrb[0].mxu0
        %v762 = vpop.f32.mrb[0].mxu0
        %v763 = vpop.f32.mrb[0].mxu0
        %764 = vdwg.mxu0
        %v765 = vrcp.pop %v715
        %v766 = vmul.f32 %v760, %v765
        %v767 = vpack.c.bf16 %v766, %v766
        %v769 = vunpack.c.l.b16 %v767
        %v770 = vpack.c.b16 %v769, %v769
        %771 = vrot.lane.b32.xlu0 %v770, 24
        %v772 = vpop.permute.xlu0 %771
        %vm774 = vcmask 257216
        %775 = vst.msk [vmem:[#allocation2] sm:$0xf] %vm774, %v772
        %v776 = vld [vmem:[#allocation2] sm:$0xf]
        %v777 = vld [vmem:[#allocation8] sm:$0xf]
        %v778 = vld [vmem:[#allocation8 + $0x4] sm:$0xf]
        %v779 = vld [vmem:[#allocation8 + $0x8] sm:$0xf]
        %v780 = vld [vmem:[#allocation8 + $0xc] sm:$0xf]
        %v781 = vld [vmem:[%s3] sm:$0x1]
        %v783 = vlaneseq
        %v784 = vshrl.u32 %v783, 7
        %v785 = vsub.s32 0, %v784
        %v786 = vrot.slane %v781, %v785
        %v792 = vunpack.c.l.b16 %v777
        %v793 = vunpack.c.l.b16 %v778
        %v794 = vunpack.c.l.b16 %v779
        %v795 = vunpack.c.l.b16 %v780
        %v796 = vpack.c.b16 %v793, %v792
        %v797 = vpack.c.b16 %v795, %v794
        %v801 = vsel %vm260, %v776, 0
        %803 = vmatprep.subr.bf16.mxu0 0
        %804 = vmatpush1.bf16.msra.mxu0 %v796
        %805 = vmatprep.subr.bf16.mxu0 0
        %806 = vmatpush1.bf16.msra.mxu0 %v797
        %807 = vmatprep.subr.bf16.mxu0 0
        %808 = vmatpush1.bf16.msra.mxu0 0
        %809 = vmatprep.subr.bf16.mxu0 0
        %810 = vmatpush1.bf16.msra.mxu0 0
        %811 = vmatprep.subr.bf16.mxu0 0
        %812 = vmatpush1.bf16.msra.mxu0 0
        %813 = vmatprep.subr.bf16.mxu0 0
        %814 = vmatpush1.bf16.msra.mxu0 0
        %815 = vmatprep.subr.bf16.mxu0 0
        %816 = vmatpush1.bf16.msra.mxu0 0
        %817 = vmatprep.subr.bf16.mxu0 0
        %818 = vmatpush1.bf16.msra.mxu0 0
        %819 = vmatprep.subr.bf16.mxu0 0
        %820 = vmatpush1.bf16.msra.mxu0 0
        %821 = vmatprep.subr.bf16.mxu0 0
        %822 = vmatpush1.bf16.msra.mxu0 0
        %823 = vmatprep.subr.bf16.mxu0 0
        %824 = vmatpush1.bf16.msra.mxu0 0
        %825 = vmatprep.subr.bf16.mxu0 0
        %826 = vmatpush1.bf16.msra.mxu0 0
        %827 = vmatprep.subr.bf16.mxu0 0
        %828 = vmatpush1.bf16.msra.mxu0 0
        %829 = vmatprep.subr.bf16.mxu0 0
        %830 = vmatpush1.bf16.msra.mxu0 0
        %831 = vmatprep.subr.bf16.mxu0 0
        %832 = vmatpush1.bf16.msra.mxu0 0
        %833 = vmatprep.subr.bf16.mxu0 0
        %834 = vmatpush1.bf16.msra.mxu0 0
        %835 = vmatprep.mubr.bf16.mxu0 0
        %836 = vmatmul.mubr.bf16.gmra.mrb[0].mxu0 %v801
        %v837 = vpop.f32.mrb[0].mxu0
        %v838 = vadd.f32 %v786, %v837
        %v839 = vpop.f32.mrb[0].mxu0
        %v840 = vpop.f32.mrb[0].mxu0
        %v841 = vpop.f32.mrb[0].mxu0
        %842 = vdwg.mxu0
        %843 = vst.msk [vmem:[%s241] sm:$0xff] %vm260, %v838
        %s844 = sand.u32 %s119, 1
        %s845 = scalar_lea.sflag [#allocation5], %s844
        %s846 = sand.u32 %s119, 1
        %s847 = smul.addr %s846, 8
        %s848 = scalar_lea.vmem [#allocation9], %s847
        // Predicated region
        $region49: #{tpu_custom_call.1} parent=35 // pred_check
          %p849 = pneg %p129
        $region50: #{tpu_custom_call.1} parent=35 // pred_check_branch
          %851 = sbr.rel (%p849) target = $region52
        $region51: #{tpu_custom_call.1} parent=35 // pred_region
          %s853 = ssub.s32 128, 128
          %854 = vsyncadd %s845, %s853
          %s855 = smul.addr %s22, 128
          %s856 = scalar_lea.hbm %s4, %s855
          %s858 = sshll.u32 %s848, 4
          %s859 = int_to_ptr.vmem [resolvable:$true] %s858
          %861 = dma.vmem_to_hbm [thread:$0]  %s859, 128, %s856, %s845
        $region52: #{tpu_custom_call.1} parent=35 // pred_fallthru
          _
      $region36: #{tpu_custom_call.1} parent=5 // pred_fallthru
        _
      %p862 = scmp.le.s32.totalorder 2, %s17
      // Predicated region
      $region53: #{tpu_custom_call.1} parent=5 // pred_check
        %p863 = pneg %p862
      $region54: #{tpu_custom_call.1} parent=5 // pred_check_branch
        %865 = sbr.rel (%p863) target = $region56
      $region55: #{tpu_custom_call.1} parent=5 // pred_region
        %s866 = ssub.s32 %s17, 2
        // Predicated region
        $region57: #{tpu_custom_call.1} parent=55 // pred_check
          %p867 = pneg %p135
        $region58: #{tpu_custom_call.1} parent=55 // pred_check_branch
          %869 = sbr.rel (%p867) target = $region60
        $region59: #{tpu_custom_call.1} parent=55 // pred_region
          %s870 = sand.u32 %s120, 1
          %s871 = scalar_lea.sflag [#allocation5], %s870
          %s872 = sand.u32 %s120, 1
          %s873 = smul.addr %s872, 8
          %s874 = scalar_lea.vmem [#allocation9], %s873
          %875 = dma.done %s871, 128
        $region60: #{tpu_custom_call.1} parent=55 // pred_fallthru
          _
      $region56: #{tpu_custom_call.1} parent=5 // pred_fallthru
        _
    $region6: #{tpu_custom_call.1} parent=1 // loop_footer
      %s21 = sadd.s32 1, %s17
    $region7: #{tpu_custom_call.1} parent=1 // loop_footer_branch
      %16 = sbr.rel target = $region3
    $region8: #{tpu_custom_call.1} parent=1 // loop_exit
      _
    %876 = vsyncpa [#allocation4], 1
    %s877 = scalar_lea.sflag [#allocation4], 1
    %878 = vsyncpa %s877, 1
    %879 = vsyncpa [#allocation7], 1
    %880 = vsyncpa [#allocation5], 1
    %s881 = scalar_lea.sflag [#allocation5], 1
    %882 = vsyncpa %s881, 1

</llo_original>
